<compile_context>
chip_gen: v6e
topology: v6e:2x2x1
jax: 0.10.0
libtpu: 0.0.40
codegen_flags: <defaults>
</compile_context>

<pallas_src>
import jax
import jax.numpy as jnp
import numpy as np
from jax.experimental import pallas as pl
from jax.experimental.pallas import tpu as pltpu


def _ocr_kernel(x_ref, kT_ref, v_ref, mask_ref,
                wp1_ref, bp1_ref, wp2_ref, bp2_ref,
                wu_ref, bu_ref,
                wf_ctx_ref, wf_x_ref, bf_ref,
                out_ref):
    cdt = x_ref.dtype  # matmul-input dtype (bf16); accumulation is always f32.

    def lin_relu(a, w_ref, b_ref):
        # y = relu(a @ W + b): 1x1 conv + folded BN + ReLU, f32 accumulation.
        y = jnp.dot(a, w_ref[...], preferred_element_type=jnp.float32) + b_ref[...]
        return jnp.maximum(y, 0.0)

    x = x_ref[...]                                                      # (TQ, C)

    # f_pixel(x): the key_channels**-0.5 softmax scale is pre-folded into wp2/bp2.
    q = lin_relu(lin_relu(x, wp1_ref, bp1_ref).astype(cdt),
                 wp2_ref, bp2_ref).astype(cdt)                          # (TQ, Kc)

    # sim = softmax(query @ key^T) over the (padded) object axis.
    # mask_ref is 0 for valid object columns, -1e30 for padded ones (single fused vadd).
    sim = jnp.dot(q, kT_ref[...], preferred_element_type=jnp.float32)  # (TQ, Mp) f32
    sim = sim + mask_ref[...]
    m = jnp.max(sim, axis=-1, keepdims=True)
    e = jnp.exp(sim - m)
    s = jnp.sum(e, axis=-1, keepdims=True)
    attn = (e * pl.reciprocal(s, approx=True)).astype(cdt)             # (TQ, Mp) bf16

    # context = attn @ value, then f_up (conv1x1 + BN + ReLU).
    ctx = jnp.dot(attn, v_ref[...], preferred_element_type=jnp.float32)  # (TQ, Kc)
    up = lin_relu(ctx.astype(cdt), wu_ref, bu_ref).astype(cdt)           # (TQ, C)

    # conv_bn_dropout(cat([context, feats])) == up @ Wf[:C] + x @ Wf[C:] + b  (concat-free).
    y = (jnp.dot(up, wf_ctx_ref[...], preferred_element_type=jnp.float32)
         + jnp.dot(x, wf_x_ref[...], preferred_element_type=jnp.float32)
         + bf_ref[...])
    out_ref[...] = jnp.maximum(y, 0.0).astype(out_ref.dtype)             # (TQ, Cout)


def _fold_bn(conv_w_oihw, gamma, beta, mean, var, eps=1e-5):
    """Fold eval-mode BatchNorm2d into a (Cin, Cout) matmul weight and (1, Cout) bias."""
    w = conv_w_oihw[:, :, 0, 0].T                    # (Cin, Cout)
    scale = gamma / jnp.sqrt(var + eps)              # (Cout,)
    w_eff = w * scale[None, :]
    b_eff = (beta - mean * scale)[None, :]           # (1, Cout)
    return w_eff.astype(jnp.float32), b_eff.astype(jnp.float32)


def init_params(key, in_channels, key_channels, out_channels):
    ks = jax.random.split(key, 16)
    i = iter(range(16))

    def conv(k, cout, cin):
        return 0.2 * jax.random.normal(k, (cout, cin, 1, 1), jnp.float32)

    def bn(k, c):
        k1, k2, k3, k4 = jax.random.split(k, 4)
        gamma = 1.0 + 0.1 * jax.random.normal(k1, (c,), jnp.float32)
        beta = 0.1 * jax.random.normal(k2, (c,), jnp.float32)
        mean = 0.05 * jax.random.normal(k3, (c,), jnp.float32)
        var = 1.0 + 0.1 * jax.random.uniform(k4, (c,), jnp.float32)
        return gamma, beta, mean, var

    C, Kc, Co = in_channels, key_channels, out_channels
    p = {}
    # f_pixel
    p['wp1'], p['bp1'] = _fold_bn(conv(ks[next(i)], Kc, C), *bn(ks[next(i)], Kc))
    p['wp2'], p['bp2'] = _fold_bn(conv(ks[next(i)], Kc, Kc), *bn(ks[next(i)], Kc))
    # f_object
    p['wo1'], p['bo1'] = _fold_bn(conv(ks[next(i)], Kc, C), *bn(ks[next(i)], Kc))
    p['wo2'], p['bo2'] = _fold_bn(conv(ks[next(i)], Kc, Kc), *bn(ks[next(i)], Kc))
    # f_down
    p['wd'], p['bd'] = _fold_bn(conv(ks[next(i)], Kc, C), *bn(ks[next(i)], Kc))
    # f_up
    p['wu'], p['bu'] = _fold_bn(conv(ks[next(i)], C, Kc), *bn(ks[next(i)], C))
    # conv_bn_dropout (input is 2C channels: [context, feats])
    wf, bf = _fold_bn(conv(ks[next(i)], Co, 2 * C), *bn(ks[next(i)], Co))
    p['wf_ctx'] = wf[:C, :]   # applied to context channels
    p['wf_x'] = wf[C:, :]     # applied to feats channels
    p['bf'] = bf
    return p


def _prepare_kernel_weights(params, key_channels, compute_dtype):
    """Cast pixel-path matmul weights to the compute dtype and fold the softmax scale into wp2/bp2
    (valid: ReLU is positively homogeneous and key_channels**-0.5 > 0)."""
    scale = key_channels ** -0.5
    w = lambda a: a.astype(compute_dtype)
    b = lambda a: a.astype(jnp.float32)
    return [
        w(params['wp1']), b(params['bp1']),
        w(params['wp2'] * scale), b(params['bp2'] * scale),   # key_channels**-0.5 folded in
        w(params['wu']), b(params['bu']),
        w(params['wf_ctx']), w(params['wf_x']), b(params['bf']),
    ]


def _proxy_key_value(proxy, params, mp, compute_dtype):
    """f_object / f_down on the tiny proxy tensor (N, M, C): computed once per batch element with
    plain f32 XLA matmuls (<0.1% of total FLOPs), padded to Mp object columns, cast to bf16."""
    lr = lambda a, w, b: jnp.maximum(a @ w + b, 0.0)
    pr = proxy.astype(jnp.float32)
    M = pr.shape[1]
    k = lr(lr(pr, params['wo1'], params['bo1']), params['wo2'], params['bo2'])   # (N, M, Kc)
    v = lr(pr, params['wd'], params['bd'])                                       # (N, M, Kc)
    kT = jnp.transpose(k, (0, 2, 1))                                             # (N, Kc, M)
    kT = jnp.pad(kT, ((0, 0), (0, 0), (0, mp - M))).astype(compute_dtype)        # (N, Kc, Mp)
    v = jnp.pad(v, ((0, 0), (0, mp - M), (0, 0))).astype(compute_dtype)          # (N, Mp, Kc)
    return kT, v


def spatial_ocr_forward_flat(x, proxy, params, key_channels, *, tq=None,
                             compute_dtype=jnp.bfloat16, out_dtype=None,
                             vmem_limit_bytes=None):
    """Channels-last entry point (preferred: no full-HBM NCHW<->NHWC transposes).
    x: (N, HW, C); proxy: (N, M, C). Returns (N, HW, Cout)."""
    N, HW, C = x.shape
    _, M, _ = proxy.shape
    Cout = params['bf'].shape[-1]
    Kc = key_channels
    out_dtype = compute_dtype if out_dtype is None else out_dtype

    if tq is None:
        # 1024 amortizes the ~0.35 us/grid-step pipeline overhead to ~few % while staying inside
        # v7x's 64 MiB VMEM; v5e/v6e (128 MiB) callers can pass tq=2048.
        tq = HW if HW <= 1024 else 1024
    assert tq == HW or tq % 16 == 0, "HW tile must be a multiple of 16 (bf16 sublane packing)"

    if vmem_limit_bytes is None:
        vmem_limit_bytes = 64 << 20

    # Pad the tiny object axis to exactly one full 128-lane vreg (do NOT round up to 256: the
    # attention matmuls are only ~10% of FLOPs and 128 is already MXU-native on v5e).
    mp = max(128, ((M + 127) // 128) * 128)

    # Proxy (object) path hoisted out of the kernel -> no per-batch scratch, both grid axes parallel.
    kT, v = _proxy_key_value(proxy, params, mp, compute_dtype)

    # Additive softmax mask row for padded object columns: 0 valid, -1e30 padded (single vadd).
    mask = jnp.where(jnp.arange(mp)[None, :] < M, 0.0, -1e30).astype(jnp.float32)   # (1, Mp)

    weights = _prepare_kernel_weights(params, key_channels, compute_dtype)
    x_c = x.astype(compute_dtype)

    const2d = lambda n, q: (0, 0)    # grid-invariant 2D blocks (weights / biases / mask)
    single = pl.Buffered(1)          # single-buffer blocks that never change within a batch element

    # Advisory cost estimate so XLA schedules the proxy precompute / neighbors around the call.
    flops = 2 * N * HW * (2 * C * Kc + Kc * Kc + 2 * Kc * mp + 2 * C * Cout)
    bytes_accessed = int(
        x_c.size * x_c.dtype.itemsize
        + N * HW * Cout * np.dtype(out_dtype).itemsize
        + kT.size * kT.dtype.itemsize + v.size * v.dtype.itemsize
        + mask.size * mask.dtype.itemsize
        + sum(int(a.size) * a.dtype.itemsize for a in weights))
    cost = pl.CostEstimate(flops=int(flops), transcendentals=int(N * HW * mp),
                           bytes_accessed=bytes_accessed)

    grid = (N, pl.cdiv(HW, tq))
    out = pl.pallas_call(
        _ocr_kernel,
        out_shape=jax.ShapeDtypeStruct((N, HW, Cout), out_dtype),
        grid_spec=pltpu.PrefetchScalarGridSpec(
            num_scalar_prefetch=0,
            grid=grid,
            in_specs=[pl.BlockSpec((None, tq, C), lambda n, q: (n, q, 0)),               # pixel tile
                      pl.BlockSpec((None, Kc, mp), lambda n, q: (n, 0, 0),               # key^T
                                   pipeline_mode=single),
                      pl.BlockSpec((None, mp, Kc), lambda n, q: (n, 0, 0),               # value
                                   pipeline_mode=single),
                      pl.BlockSpec((1, mp), const2d, pipeline_mode=single)]              # pad mask
                     + [pl.BlockSpec(a.shape, const2d, pipeline_mode=single)
                        for a in weights],
            out_specs=pl.BlockSpec((None, tq, Cout), lambda n, q: (n, q, 0)),
        ),
        # Every grid step writes a disjoint output tile and reads no scratch, so both the batch
        # axis and the HW axis are "parallel" (shards across both v7x TensorCores).
        compiler_params=pltpu.CompilerParams(
            dimension_semantics=("parallel", "parallel"),
            vmem_limit_bytes=int(vmem_limit_bytes)),
        cost_estimate=cost,
    )(x_c, kT, v, mask, *weights)
    return out


def spatial_ocr_forward(feats_nchw, proxy_nchw, params, key_channels, *, tq=None,
                        compute_dtype=jnp.bfloat16, out_dtype=None, vmem_limit_bytes=None):
    """NCHW-compatible wrapper matching the PyTorch module.  The two full-HBM transpose passes here
    roughly double the kernel's own HBM traffic -- callers that already hold channels-last
    activations should use spatial_ocr_forward_flat end-to-end instead."""
    N, C, H, W = feats_nchw.shape
    _, _, Hp, Wp = proxy_nchw.shape
    x = jnp.transpose(feats_nchw, (0, 2, 3, 1)).reshape(N, H * W, C)
    pr = jnp.transpose(proxy_nchw, (0, 2, 3, 1)).reshape(N, Hp * Wp, C)
    out = spatial_ocr_forward_flat(x, pr, params, key_channels, tq=tq,
                                   compute_dtype=compute_dtype, out_dtype=out_dtype,
                                   vmem_limit_bytes=vmem_limit_bytes)
    Cout = out.shape[-1]
    return jnp.transpose(out.reshape(N, H, W, Cout), (0, 3, 1, 2))


def spatial_ocr_reference(feats_nchw, proxy_nchw, params, key_channels):
    """Pure-JAX f32 reference mirroring the PyTorch forward (eval mode)."""
    N, C, H, W = feats_nchw.shape
    _, _, Hp, Wp = proxy_nchw.shape
    x = jnp.transpose(feats_nchw, (0, 2, 3, 1)).reshape(N, H * W, C)
    pr = jnp.transpose(proxy_nchw, (0, 2, 3, 1)).reshape(N, Hp * Wp, C)

    def lr(a, w, b):
        return jnp.maximum(a @ w + b, 0.0)

    q = lr(lr(x, params['wp1'], params['bp1']), params['wp2'], params['bp2'])
    k = lr(lr(pr, params['wo1'], params['bo1']), params['wo2'], params['bo2'])
    v = lr(pr, params['wd'], params['bd'])
    sim = jnp.einsum('nqc,nkc->nqk', q, k) * (key_channels ** -0.5)
    sim = jax.nn.softmax(sim, axis=-1)
    ctx = jnp.einsum('nqk,nkc->nqc', sim, v)
    up = lr(ctx, params['wu'], params['bu'])
    cat = jnp.concatenate([up, x], axis=-1)
    wf = jnp.concatenate([params['wf_ctx'], params['wf_x']], axis=0)
    out = jnp.maximum(cat @ wf + params['bf'], 0.0)
    Cout = out.shape[-1]
    return jnp.transpose(out.reshape(N, H, W, Cout), (0, 3, 1, 2))


if __name__ == "__main__":
    key = jax.random.PRNGKey(0)
    k_feat, k_proxy, k_param = jax.random.split(key, 3)

    N, C, H, W = 2, 8, 16, 16          # in_channels = 8
    Kc, Cout = 4, 8                    # key_channels = 4, out_channels = 8
    K_obj = 8                          # proxy: 8 object regions -> (N, C, 8, 1)

    feats = jax.random.normal(k_feat, (N, C, H, W), jnp.float32)
    proxy = jax.random.normal(k_proxy, (N, C, K_obj, 1), jnp.float32)
    params = init_params(k_param, C, Kc, Cout)

    # tq=128 exercises the HW tiling with the fully-parallel grid (grid = (2, 2)).
    out = spatial_ocr_forward(feats, proxy, params, Kc, tq=128)
    out = jax.block_until_ready(out)

    ref = spatial_ocr_reference(feats, proxy, params, Kc)
    assert out.shape == (N, Cout, H, W), out.shape
    # bf16 matmul inputs + approximate softmax reciprocal -> compare with relaxed tolerance.
    out_f32 = out.astype(jnp.float32)
    assert jnp.allclose(out_f32, ref, atol=1e-1, rtol=5e-2), \
        float(jnp.max(jnp.abs(out_f32 - ref)))

    print("KERNEL_OK")
</pallas_src>

<mosaic_0001>
module attributes {stable_mosaic.version = 11 : i64} {
  func.func @_ocr_kernel(%arg0: i32, %arg1: i32, %arg2: memref<1x128x8xbf16, #tpu.memory_space<vmem>>, %arg3: memref<1x4x128xbf16, #tpu.memory_space<vmem>>, %arg4: memref<1x128x4xbf16, #tpu.memory_space<vmem>>, %arg5: memref<1x128xf32, #tpu.memory_space<vmem>>, %arg6: memref<8x4xbf16, #tpu.memory_space<vmem>>, %arg7: memref<1x4xf32, #tpu.memory_space<vmem>>, %arg8: memref<4x4xbf16, #tpu.memory_space<vmem>>, %arg9: memref<1x4xf32, #tpu.memory_space<vmem>>, %arg10: memref<4x8xbf16, #tpu.memory_space<vmem>>, %arg11: memref<1x8xf32, #tpu.memory_space<vmem>>, %arg12: memref<8x8xbf16, #tpu.memory_space<vmem>>, %arg13: memref<8x8xbf16, #tpu.memory_space<vmem>>, %arg14: memref<1x8xf32, #tpu.memory_space<vmem>>, %arg15: memref<1x128x8xbf16, #tpu.memory_space<vmem>>) attributes {dimension_semantics = [#tpu.dimension_semantics<parallel>, #tpu.dimension_semantics<parallel>], iteration_bounds = array<i64: 2, 2>, scalar_prefetch = 0 : i64, scratch_operands = 0 : i64, tpu.core_type = #tpu.core_type<tc>, window_params = [{transform_indices = @transform_0, window_bounds = array<i64: 1, 128, 8>}, {pipeline_mode = #tpu.pipeline_mode<synchronous>, transform_indices = @transform_1, window_bounds = array<i64: 1, 4, 128>}, {pipeline_mode = #tpu.pipeline_mode<synchronous>, transform_indices = @transform_2, window_bounds = array<i64: 1, 128, 4>}, {pipeline_mode = #tpu.pipeline_mode<synchronous>, transform_indices = @transform_3, window_bounds = array<i64: 1, 128>}, {pipeline_mode = #tpu.pipeline_mode<synchronous>, transform_indices = @transform_4, window_bounds = array<i64: 8, 4>}, {pipeline_mode = #tpu.pipeline_mode<synchronous>, transform_indices = @transform_5, window_bounds = array<i64: 1, 4>}, {pipeline_mode = #tpu.pipeline_mode<synchronous>, transform_indices = @transform_6, window_bounds = array<i64: 4, 4>}, {pipeline_mode = #tpu.pipeline_mode<synchronous>, transform_indices = @transform_7, window_bounds = array<i64: 1, 4>}, {pipeline_mode = #tpu.pipeline_mode<synchronous>, transform_indices = @transform_8, window_bounds = array<i64: 4, 8>}, {pipeline_mode = #tpu.pipeline_mode<synchronous>, transform_indices = @transform_9, window_bounds = array<i64: 1, 8>}, {pipeline_mode = #tpu.pipeline_mode<synchronous>, transform_indices = @transform_10, window_bounds = array<i64: 8, 8>}, {pipeline_mode = #tpu.pipeline_mode<synchronous>, transform_indices = @transform_11, window_bounds = array<i64: 8, 8>}, {pipeline_mode = #tpu.pipeline_mode<synchronous>, transform_indices = @transform_12, window_bounds = array<i64: 1, 8>}, {transform_indices = @transform_13, window_bounds = array<i64: 1, 128, 8>}]} {
    %c0 = arith.constant 0 : index
    %c0_0 = arith.constant 0 : index
    %c0_1 = arith.constant 0 : index
    %0 = vector.load %arg2[%c0, %c0_0, %c0_1] : memref<1x128x8xbf16, #tpu.memory_space<vmem>>, vector<1x128x8xbf16>
    %1 = vector.shape_cast %0 : vector<1x128x8xbf16> to vector<128x8xbf16>
    %c0_2 = arith.constant 0 : index
    %c0_3 = arith.constant 0 : index
    %2 = vector.load %arg6[%c0_2, %c0_3] : memref<8x4xbf16, #tpu.memory_space<vmem>>, vector<8x4xbf16>
    %cst = arith.constant dense<0.000000e+00> : vector<128x4xf32>
    %3 = tpu.matmul %1, %2, %cst {dimension_numbers = #tpu.dot_dimension_numbers<[1], [0], [0], [1], [0, 0, 1, 1], [], []>} : vector<128x8xbf16>, vector<8x4xbf16>, vector<128x4xf32> -> vector<128x4xf32>
    %c0_4 = arith.constant 0 : index
    %c0_5 = arith.constant 0 : index
    %4 = vector.load %arg7[%c0_4, %c0_5] : memref<1x4xf32, #tpu.memory_space<vmem>>, vector<1x4xf32>
    %5 = vector.broadcast %4 : vector<1x4xf32> to vector<128x4xf32>
    %6 = arith.addf %3, %5 : vector<128x4xf32>
    %cst_6 = arith.constant 0.000000e+00 : f32
    %7 = vector.broadcast %cst_6 : f32 to vector<128x4xf32>
    %8 = arith.maximumf %6, %7 : vector<128x4xf32>
    %9 = arith.truncf %8 : vector<128x4xf32> to vector<128x4xbf16>
    %c0_7 = arith.constant 0 : index
    %c0_8 = arith.constant 0 : index
    %10 = vector.load %arg8[%c0_7, %c0_8] : memref<4x4xbf16, #tpu.memory_space<vmem>>, vector<4x4xbf16>
    %cst_9 = arith.constant dense<0.000000e+00> : vector<128x4xf32>
    %11 = tpu.matmul %9, %10, %cst_9 {dimension_numbers = #tpu.dot_dimension_numbers<[1], [0], [0], [1], [0, 0, 1, 1], [], []>} : vector<128x4xbf16>, vector<4x4xbf16>, vector<128x4xf32> -> vector<128x4xf32>
    %c0_10 = arith.constant 0 : index
    %c0_11 = arith.constant 0 : index
    %12 = vector.load %arg9[%c0_10, %c0_11] : memref<1x4xf32, #tpu.memory_space<vmem>>, vector<1x4xf32>
    %13 = vector.broadcast %12 : vector<1x4xf32> to vector<128x4xf32>
    %14 = arith.addf %11, %13 : vector<128x4xf32>
    %cst_12 = arith.constant 0.000000e+00 : f32
    %15 = vector.broadcast %cst_12 : f32 to vector<128x4xf32>
    %16 = arith.maximumf %14, %15 : vector<128x4xf32>
    %17 = arith.truncf %16 : vector<128x4xf32> to vector<128x4xbf16>
    %c0_13 = arith.constant 0 : index
    %c0_14 = arith.constant 0 : index
    %c0_15 = arith.constant 0 : index
    %18 = vector.load %arg3[%c0_13, %c0_14, %c0_15] : memref<1x4x128xbf16, #tpu.memory_space<vmem>>, vector<1x4x128xbf16>
    %19 = vector.shape_cast %18 : vector<1x4x128xbf16> to vector<4x128xbf16>
    %cst_16 = arith.constant dense<0.000000e+00> : vector<128x128xf32>
    %20 = tpu.matmul %17, %19, %cst_16 {dimension_numbers = #tpu.dot_dimension_numbers<[1], [0], [0], [1], [0, 0, 1, 1], [], []>} : vector<128x4xbf16>, vector<4x128xbf16>, vector<128x128xf32> -> vector<128x128xf32>
    %c0_17 = arith.constant 0 : index
    %c0_18 = arith.constant 0 : index
    %21 = vector.load %arg5[%c0_17, %c0_18] : memref<1x128xf32, #tpu.memory_space<vmem>>, vector<1x128xf32>
    %22 = vector.broadcast %21 : vector<1x128xf32> to vector<128x128xf32>
    %23 = arith.addf %20, %22 : vector<128x128xf32>
    %cst_19 = arith.constant dense<0xFF800000> : vector<128xf32>
    %24 = vector.multi_reduction <maximumf>, %23, %cst_19 [1] : vector<128x128xf32> to vector<128xf32>
    %25 = vector.shape_cast %24 : vector<128xf32> to vector<128x1xf32>
    %26 = vector.broadcast %25 : vector<128x1xf32> to vector<128x128xf32>
    %27 = arith.subf %23, %26 : vector<128x128xf32>
    %28 = math.exp %27 : vector<128x128xf32>
    %cst_20 = arith.constant dense<0.000000e+00> : vector<128xf32>
    %29 = vector.multi_reduction <add>, %28, %cst_20 [1] : vector<128x128xf32> to vector<128xf32>
    %30 = vector.shape_cast %29 : vector<128xf32> to vector<128x1xf32>
    %31 = tpu.reciprocal %30 {approx = true} : vector<128x1xf32> -> vector<128x1xf32>
    %32 = vector.broadcast %31 : vector<128x1xf32> to vector<128x128xf32>
    %33 = arith.mulf %28, %32 : vector<128x128xf32>
    %34 = arith.truncf %33 : vector<128x128xf32> to vector<128x128xbf16>
    %c0_21 = arith.constant 0 : index
    %c0_22 = arith.constant 0 : index
    %c0_23 = arith.constant 0 : index
    %35 = vector.load %arg4[%c0_21, %c0_22, %c0_23] : memref<1x128x4xbf16, #tpu.memory_space<vmem>>, vector<1x128x4xbf16>
    %36 = vector.shape_cast %35 : vector<1x128x4xbf16> to vector<128x4xbf16>
    %cst_24 = arith.constant dense<0.000000e+00> : vector<128x4xf32>
    %37 = tpu.matmul %34, %36, %cst_24 {dimension_numbers = #tpu.dot_dimension_numbers<[1], [0], [0], [1], [0, 0, 1, 1], [], []>} : vector<128x128xbf16>, vector<128x4xbf16>, vector<128x4xf32> -> vector<128x4xf32>
    %38 = arith.truncf %37 : vector<128x4xf32> to vector<128x4xbf16>
    %c0_25 = arith.constant 0 : index
    %c0_26 = arith.constant 0 : index
    %39 = vector.load %arg10[%c0_25, %c0_26] : memref<4x8xbf16, #tpu.memory_space<vmem>>, vector<4x8xbf16>
    %cst_27 = arith.constant dense<0.000000e+00> : vector<128x8xf32>
    %40 = tpu.matmul %38, %39, %cst_27 {dimension_numbers = #tpu.dot_dimension_numbers<[1], [0], [0], [1], [0, 0, 1, 1], [], []>} : vector<128x4xbf16>, vector<4x8xbf16>, vector<128x8xf32> -> vector<128x8xf32>
    %c0_28 = arith.constant 0 : index
    %c0_29 = arith.constant 0 : index
    %41 = vector.load %arg11[%c0_28, %c0_29] : memref<1x8xf32, #tpu.memory_space<vmem>>, vector<1x8xf32>
    %42 = vector.broadcast %41 : vector<1x8xf32> to vector<128x8xf32>
    %43 = arith.addf %40, %42 : vector<128x8xf32>
    %cst_30 = arith.constant 0.000000e+00 : f32
    %44 = vector.broadcast %cst_30 : f32 to vector<128x8xf32>
    %45 = arith.maximumf %43, %44 : vector<128x8xf32>
    %46 = arith.truncf %45 : vector<128x8xf32> to vector<128x8xbf16>
    %c0_31 = arith.constant 0 : index
    %c0_32 = arith.constant 0 : index
    %47 = vector.load %arg12[%c0_31, %c0_32] : memref<8x8xbf16, #tpu.memory_space<vmem>>, vector<8x8xbf16>
    %cst_33 = arith.constant dense<0.000000e+00> : vector<128x8xf32>
    %48 = tpu.matmul %46, %47, %cst_33 {dimension_numbers = #tpu.dot_dimension_numbers<[1], [0], [0], [1], [0, 0, 1, 1], [], []>} : vector<128x8xbf16>, vector<8x8xbf16>, vector<128x8xf32> -> vector<128x8xf32>
    %c0_34 = arith.constant 0 : index
    %c0_35 = arith.constant 0 : index
    %49 = vector.load %arg13[%c0_34, %c0_35] : memref<8x8xbf16, #tpu.memory_space<vmem>>, vector<8x8xbf16>
    %cst_36 = arith.constant dense<0.000000e+00> : vector<128x8xf32>
    %50 = tpu.matmul %1, %49, %cst_36 {dimension_numbers = #tpu.dot_dimension_numbers<[1], [0], [0], [1], [0, 0, 1, 1], [], []>} : vector<128x8xbf16>, vector<8x8xbf16>, vector<128x8xf32> -> vector<128x8xf32>
    %51 = arith.addf %48, %50 : vector<128x8xf32>
    %c0_37 = arith.constant 0 : index
    %c0_38 = arith.constant 0 : index
    %52 = vector.load %arg14[%c0_37, %c0_38] : memref<1x8xf32, #tpu.memory_space<vmem>>, vector<1x8xf32>
    %53 = vector.broadcast %52 : vector<1x8xf32> to vector<128x8xf32>
    %54 = arith.addf %51, %53 : vector<128x8xf32>
    %cst_39 = arith.constant 0.000000e+00 : f32
    %55 = vector.broadcast %cst_39 : f32 to vector<128x8xf32>
    %56 = arith.maximumf %54, %55 : vector<128x8xf32>
    %57 = arith.truncf %56 : vector<128x8xf32> to vector<128x8xbf16>
    %c0_40 = arith.constant 0 : index
    %c0_41 = arith.constant 0 : index
    %c0_42 = arith.constant 0 : index
    %58 = vector.load %arg15[%c0_40, %c0_41, %c0_42] : memref<1x128x8xbf16, #tpu.memory_space<vmem>>, vector<1x128x8xbf16>
    %59 = vector.shape_cast %58 : vector<1x128x8xbf16> to vector<128x8xbf16>
    %60 = vector.shape_cast %57 : vector<128x8xbf16> to vector<1x128x8xbf16>
    tpu.vector_store %arg15[%c0_40, %c0_41, %c0_42], %60 {strides = array<i32>} : memref<1x128x8xbf16, #tpu.memory_space<vmem>>, vector<1x128x8xbf16>,
    return
  }
  func.func @transform_0(%arg0: i32, %arg1: i32) -> (i32, i32, i32) {
    %c0_i32 = arith.constant 0 : i32
    %c0_i32_0 = arith.constant 0 : i32
    return %arg0, %arg1, %c0_i32 : i32, i32, i32
  }
  func.func @transform_1(%arg0: i32, %arg1: i32) -> (i32, i32, i32) {
    %c0_i32 = arith.constant 0 : i32
    %c0_i32_0 = arith.constant 0 : i32
    %c0_i32_1 = arith.constant 0 : i32
    return %arg0, %c0_i32, %c0_i32_0 : i32, i32, i32
  }
  func.func @transform_2(%arg0: i32, %arg1: i32) -> (i32, i32, i32) {
    %c0_i32 = arith.constant 0 : i32
    %c0_i32_0 = arith.constant 0 : i32
    %c0_i32_1 = arith.constant 0 : i32
    return %arg0, %c0_i32, %c0_i32_0 : i32, i32, i32
  }
  func.func @transform_3(%arg0: i32, %arg1: i32) -> (i32, i32) {
    %c0_i32 = arith.constant 0 : i32
    %c0_i32_0 = arith.constant 0 : i32
    %c0_i32_1 = arith.constant 0 : i32
    return %c0_i32, %c0_i32_0 : i32, i32
  }
  func.func @transform_4(%arg0: i32, %arg1: i32) -> (i32, i32) {
    %c0_i32 = arith.constant 0 : i32
    %c0_i32_0 = arith.constant 0 : i32
    %c0_i32_1 = arith.constant 0 : i32
    return %c0_i32, %c0_i32_0 : i32, i32
  }
  func.func @transform_5(%arg0: i32, %arg1: i32) -> (i32, i32) {
    %c0_i32 = arith.constant 0 : i32
    %c0_i32_0 = arith.constant 0 : i32
    %c0_i32_1 = arith.constant 0 : i32
    return %c0_i32, %c0_i32_0 : i32, i32
  }
  func.func @transform_6(%arg0: i32, %arg1: i32) -> (i32, i32) {
    %c0_i32 = arith.constant 0 : i32
    %c0_i32_0 = arith.constant 0 : i32
    %c0_i32_1 = arith.constant 0 : i32
    return %c0_i32, %c0_i32_0 : i32, i32
  }
  func.func @transform_7(%arg0: i32, %arg1: i32) -> (i32, i32) {
    %c0_i32 = arith.constant 0 : i32
    %c0_i32_0 = arith.constant 0 : i32
    %c0_i32_1 = arith.constant 0 : i32
    return %c0_i32, %c0_i32_0 : i32, i32
  }
  func.func @transform_8(%arg0: i32, %arg1: i32) -> (i32, i32) {
    %c0_i32 = arith.constant 0 : i32
    %c0_i32_0 = arith.constant 0 : i32
    %c0_i32_1 = arith.constant 0 : i32
    return %c0_i32, %c0_i32_0 : i32, i32
  }
  func.func @transform_9(%arg0: i32, %arg1: i32) -> (i32, i32) {
    %c0_i32 = arith.constant 0 : i32
    %c0_i32_0 = arith.constant 0 : i32
    %c0_i32_1 = arith.constant 0 : i32
    return %c0_i32, %c0_i32_0 : i32, i32
  }
  func.func @transform_10(%arg0: i32, %arg1: i32) -> (i32, i32) {
    %c0_i32 = arith.constant 0 : i32
    %c0_i32_0 = arith.constant 0 : i32
    %c0_i32_1 = arith.constant 0 : i32
    return %c0_i32, %c0_i32_0 : i32, i32
  }
  func.func @transform_11(%arg0: i32, %arg1: i32) -> (i32, i32) {
    %c0_i32 = arith.constant 0 : i32
    %c0_i32_0 = arith.constant 0 : i32
    %c0_i32_1 = arith.constant 0 : i32
    return %c0_i32, %c0_i32_0 : i32, i32
  }
  func.func @transform_12(%arg0: i32, %arg1: i32) -> (i32, i32) {
    %c0_i32 = arith.constant 0 : i32
    %c0_i32_0 = arith.constant 0 : i32
    %c0_i32_1 = arith.constant 0 : i32
    return %c0_i32, %c0_i32_0 : i32, i32
  }
  func.func @transform_13(%arg0: i32, %arg1: i32) -> (i32, i32, i32) {
    %c0_i32 = arith.constant 0 : i32
    %c0_i32_0 = arith.constant 0 : i32
    return %arg0, %arg1, %c0_i32 : i32, i32, i32
  }
}

</mosaic_0001>

<llo_original>
// kernel: tpu_custom_call.1
$region0: #{tpu_custom_call.1}
  #allocation0 [shape = 'u32[]', space=smem, size = 0x4, offset = 0x4, fixed_abs, tag = 'smem constant byte address 0x4 - core index']
  #allocation1 [shape = 'u32[144,128]{1,0:T(1,128)}', space=vmem, size = 0x12000, scoped, tag = 'internal scratch']
  %s0 = inlined_call_operand.vmem [shape: bf16[2,256,8], index: 0, kind: input, shape index: {}]
  %s1 = inlined_call_operand.vmem [shape: bf16[2,4,128], index: 1, kind: input, shape index: {}]
  %s2 = inlined_call_operand.vmem [shape: bf16[2,128,4], index: 2, kind: input, shape index: {}]
  %s3 = inlined_call_operand.vmem [shape: f32[1,128], index: 3, kind: input, shape index: {}]
  %s4 = inlined_call_operand.vmem [shape: bf16[8,4], index: 4, kind: input, shape index: {}]
  %s5 = inlined_call_operand.vmem [shape: f32[1,4], index: 5, kind: input, shape index: {}]
  %s6 = inlined_call_operand.vmem [shape: bf16[4,4], index: 6, kind: input, shape index: {}]
  %s7 = inlined_call_operand.vmem [shape: f32[1,4], index: 7, kind: input, shape index: {}]
  %s8 = inlined_call_operand.vmem [shape: bf16[4,8], index: 8, kind: input, shape index: {}]
  %s9 = inlined_call_operand.vmem [shape: f32[1,8], index: 9, kind: input, shape index: {}]
  %s10 = inlined_call_operand.vmem [shape: bf16[8,8], index: 10, kind: input, shape index: {}]
  %s11 = inlined_call_operand.vmem [shape: bf16[8,8], index: 11, kind: input, shape index: {}]
  %s12 = inlined_call_operand.vmem [shape: f32[1,8], index: 12, kind: input, shape index: {}]
  %s13 = inlined_call_operand.vmem [shape: bf16[2,256,8], index: 13, kind: output, shape index: {}]
  %s14 = sld [smem:[#allocation0]]
  $region85: #{tpu_custom_call.1} parent=0
    _
  %s16 = ssub.s32 1, %s14
  %s17 = scalar_select 0, %s16, %s14
  loop: start=0, step=1, limit=6
  $region2: #{tpu_custom_call.1} parent=0 // loop_pre_header
    _
  $region3: #{tpu_custom_call.1} parent=0 // loop_header
    %s19 = sphi 0, %s23
    %p20 = scmp.ge.s32.totalorder %s19, 6
    %s26 = sphi 0, %s38
    %s27 = sphi 0, %s34
    %s28 = sphi 0, %s26
    %s29 = sphi 0, %s27
    %s30 = sphi 0, %s28
    %s31 = sphi 0, %s29
    %s43 = sphi 0, %s45
    %s46 = sphi 0, %s43
    %s47 = sphi 0, %s46
    %s63 = sphi 0, %s47
    %s69 = sphi 0, %s71
    %s72 = sphi 0, %s69
    %s73 = sphi 0, %s72
    %s89 = sphi 0, %s73
    %s95 = sphi 0, %s97
    %s98 = sphi 0, %s95
    %s99 = sphi 0, %s98
    %s115 = sphi 0, %s99
    %s119 = sphi 0, %s119
    %s121 = sphi 0, %s119
    %s122 = sphi 0, %s121
    %s136 = sphi 0, %s122
    %s140 = sphi 0, %s140
    %s142 = sphi 0, %s140
    %s143 = sphi 0, %s142
    %s157 = sphi 0, %s143
    %s161 = sphi 0, %s161
    %s163 = sphi 0, %s161
    %s164 = sphi 0, %s163
    %s178 = sphi 0, %s164
    %s182 = sphi 0, %s182
    %s184 = sphi 0, %s182
    %s185 = sphi 0, %s184
    %s199 = sphi 0, %s185
    %s203 = sphi 0, %s203
    %s205 = sphi 0, %s203
    %s206 = sphi 0, %s205
    %s220 = sphi 0, %s206
    %s224 = sphi 0, %s224
    %s226 = sphi 0, %s224
    %s227 = sphi 0, %s226
    %s241 = sphi 0, %s227
    %s245 = sphi 0, %s245
    %s247 = sphi 0, %s245
    %s248 = sphi 0, %s247
    %s262 = sphi 0, %s248
    %s266 = sphi 0, %s266
    %s268 = sphi 0, %s266
    %s269 = sphi 0, %s268
    %s283 = sphi 0, %s269
    %s287 = sphi 0, %s287
    %s289 = sphi 0, %s287
    %s290 = sphi 0, %s289
    %s304 = sphi 0, %s290
    %s308 = sphi 0, %s308
    %s310 = sphi 0, %s308
    %s311 = sphi 0, %s310
    %s325 = sphi 0, %s311
    %s333 = sphi 0, %s335
    %s336 = sphi 0, %s333
    %s337 = sphi 0, %s336
    %s353 = sphi 0, %s337
  $region4: #{tpu_custom_call.1} parent=0 // loop_header_branch
    %22 = sbr.rel (%p20) target = $region8
  $region5: #{tpu_custom_call.1} parent=0 // loop_body
    %s24 = ssub.s32 %s19, 1
    %s25 = ssub.s32 %s19, 2
    %s32 = sadd.s32 1, %s27
    %p33 = scmp.ge.s32.totalorder %s32, 2
    %s34 = scalar_select %p33, 0, %s32
    %s35 = sadd.s32 1, %s26
    %s36 = scalar_select %p33, %s35, %s26
    %p37 = scmp.ge.s32.totalorder %s36, 2
    %s38 = scalar_select %p37, 0, %s36
    %s39 = ssub.s32 %s26, %s38
    %s40 = ssub.s32 %s27, %s34
    %s41 = sor.u32 %s39, %s40
    %p42 = scmp.eq.s32.totalorder %s41, 0
    %s44 = sadd.s32 %s43, 1
    %s45 = scalar_select %p42, %s43, %s44
    %p48 = pneg %p42
    %p49 = scmp.eq.s32.totalorder %s19, 3
    %p50 = por %p48, %p49
    %p51 = scmp.ne.s32.totalorder %s43, %s46
    %p52 = scmp.eq.s32.totalorder %s19, 0
    %p53 = por %p51, %p52
    %p54 = scmp.ne.s32.totalorder %s43, %s46
    %p55 = scmp.eq.s32.totalorder %s24, 3
    %p56 = por %p54, %p55
    %p57 = scmp.ne.s32.totalorder %s46, %s47
    %p58 = scmp.eq.s32.totalorder %s24, 0
    %p59 = por %p57, %p58
    %p60 = scmp.ne.s32.totalorder %s46, %s47
    %p61 = scmp.eq.s32.totalorder %s25, 3
    %p62 = por %p60, %p61
    %p64 = scmp.ne.s32.totalorder %s47, %s63
    %p65 = scmp.eq.s32.totalorder %s25, 0
    %p66 = por %p64, %p65
    %s67 = ssub.s32 %s26, %s38
    %p68 = scmp.eq.s32.totalorder %s67, 0
    %s70 = sadd.s32 %s69, 1
    %s71 = scalar_select %p68, %s69, %s70
    %p74 = pneg %p68
    %p75 = scmp.eq.s32.totalorder %s19, 3
    %p76 = por %p74, %p75
    %p77 = scmp.ne.s32.totalorder %s69, %s72
    %p78 = scmp.eq.s32.totalorder %s19, 0
    %p79 = por %p77, %p78
    %p80 = scmp.ne.s32.totalorder %s69, %s72
    %p81 = scmp.eq.s32.totalorder %s24, 3
    %p82 = por %p80, %p81
    %p83 = scmp.ne.s32.totalorder %s72, %s73
    %p84 = scmp.eq.s32.totalorder %s24, 0
    %p85 = por %p83, %p84
    %p86 = scmp.ne.s32.totalorder %s72, %s73
    %p87 = scmp.eq.s32.totalorder %s25, 3
    %p88 = por %p86, %p87
    %p90 = scmp.ne.s32.totalorder %s73, %s89
    %p91 = scmp.eq.s32.totalorder %s25, 0
    %p92 = por %p90, %p91
    %s93 = ssub.s32 %s26, %s38
    %p94 = scmp.eq.s32.totalorder %s93, 0
    %s96 = sadd.s32 %s95, 1
    %s97 = scalar_select %p94, %s95, %s96
    %p100 = pneg %p94
    %p101 = scmp.eq.s32.totalorder %s19, 3
    %p102 = por %p100, %p101
    %p103 = scmp.ne.s32.totalorder %s95, %s98
    %p104 = scmp.eq.s32.totalorder %s19, 0
    %p105 = por %p103, %p104
    %p106 = scmp.ne.s32.totalorder %s95, %s98
    %p107 = scmp.eq.s32.totalorder %s24, 3
    %p108 = por %p106, %p107
    %p109 = scmp.ne.s32.totalorder %s98, %s99
    %p110 = scmp.eq.s32.totalorder %s24, 0
    %p111 = por %p109, %p110
    %p112 = scmp.ne.s32.totalorder %s98, %s99
    %p113 = scmp.eq.s32.totalorder %s25, 3
    %p114 = por %p112, %p113
    %p116 = scmp.ne.s32.totalorder %s99, %s115
    %p117 = scmp.eq.s32.totalorder %s25, 0
    %p118 = por %p116, %p117
    %s120 = sadd.s32 %s119, 1
    %p123 = scmp.eq.s32.totalorder %s19, 3
    %p124 = scmp.ne.s32.totalorder %s119, %s121
    %p125 = scmp.eq.s32.totalorder %s19, 0
    %p126 = por %p124, %p125
    %p127 = scmp.ne.s32.totalorder %s119, %s121
    %p128 = scmp.eq.s32.totalorder %s24, 3
    %p129 = por %p127, %p128
    %p130 = scmp.ne.s32.totalorder %s121, %s122
    %p131 = scmp.eq.s32.totalorder %s24, 0
    %p132 = por %p130, %p131
    %p133 = scmp.ne.s32.totalorder %s121, %s122
    %p134 = scmp.eq.s32.totalorder %s25, 3
    %p135 = por %p133, %p134
    %p137 = scmp.ne.s32.totalorder %s122, %s136
    %p138 = scmp.eq.s32.totalorder %s25, 0
    %p139 = por %p137, %p138
    %s141 = sadd.s32 %s140, 1
    %p144 = scmp.eq.s32.totalorder %s19, 3
    %p145 = scmp.ne.s32.totalorder %s140, %s142
    %p146 = scmp.eq.s32.totalorder %s19, 0
    %p147 = por %p145, %p146
    %p148 = scmp.ne.s32.totalorder %s140, %s142
    %p149 = scmp.eq.s32.totalorder %s24, 3
    %p150 = por %p148, %p149
    %p151 = scmp.ne.s32.totalorder %s142, %s143
    %p152 = scmp.eq.s32.totalorder %s24, 0
    %p153 = por %p151, %p152
    %p154 = scmp.ne.s32.totalorder %s142, %s143
    %p155 = scmp.eq.s32.totalorder %s25, 3
    %p156 = por %p154, %p155
    %p158 = scmp.ne.s32.totalorder %s143, %s157
    %p159 = scmp.eq.s32.totalorder %s25, 0
    %p160 = por %p158, %p159
    %s162 = sadd.s32 %s161, 1
    %p165 = scmp.eq.s32.totalorder %s19, 3
    %p166 = scmp.ne.s32.totalorder %s161, %s163
    %p167 = scmp.eq.s32.totalorder %s19, 0
    %p168 = por %p166, %p167
    %p169 = scmp.ne.s32.totalorder %s161, %s163
    %p170 = scmp.eq.s32.totalorder %s24, 3
    %p171 = por %p169, %p170
    %p172 = scmp.ne.s32.totalorder %s163, %s164
    %p173 = scmp.eq.s32.totalorder %s24, 0
    %p174 = por %p172, %p173
    %p175 = scmp.ne.s32.totalorder %s163, %s164
    %p176 = scmp.eq.s32.totalorder %s25, 3
    %p177 = por %p175, %p176
    %p179 = scmp.ne.s32.totalorder %s164, %s178
    %p180 = scmp.eq.s32.totalorder %s25, 0
    %p181 = por %p179, %p180
    %s183 = sadd.s32 %s182, 1
    %p186 = scmp.eq.s32.totalorder %s19, 3
    %p187 = scmp.ne.s32.totalorder %s182, %s184
    %p188 = scmp.eq.s32.totalorder %s19, 0
    %p189 = por %p187, %p188
    %p190 = scmp.ne.s32.totalorder %s182, %s184
    %p191 = scmp.eq.s32.totalorder %s24, 3
    %p192 = por %p190, %p191
    %p193 = scmp.ne.s32.totalorder %s184, %s185
    %p194 = scmp.eq.s32.totalorder %s24, 0
    %p195 = por %p193, %p194
    %p196 = scmp.ne.s32.totalorder %s184, %s185
    %p197 = scmp.eq.s32.totalorder %s25, 3
    %p198 = por %p196, %p197
    %p200 = scmp.ne.s32.totalorder %s185, %s199
    %p201 = scmp.eq.s32.totalorder %s25, 0
    %p202 = por %p200, %p201
    %s204 = sadd.s32 %s203, 1
    %p207 = scmp.eq.s32.totalorder %s19, 3
    %p208 = scmp.ne.s32.totalorder %s203, %s205
    %p209 = scmp.eq.s32.totalorder %s19, 0
    %p210 = por %p208, %p209
    %p211 = scmp.ne.s32.totalorder %s203, %s205
    %p212 = scmp.eq.s32.totalorder %s24, 3
    %p213 = por %p211, %p212
    %p214 = scmp.ne.s32.totalorder %s205, %s206
    %p215 = scmp.eq.s32.totalorder %s24, 0
    %p216 = por %p214, %p215
    %p217 = scmp.ne.s32.totalorder %s205, %s206
    %p218 = scmp.eq.s32.totalorder %s25, 3
    %p219 = por %p217, %p218
    %p221 = scmp.ne.s32.totalorder %s206, %s220
    %p222 = scmp.eq.s32.totalorder %s25, 0
    %p223 = por %p221, %p222
    %s225 = sadd.s32 %s224, 1
    %p228 = scmp.eq.s32.totalorder %s19, 3
    %p229 = scmp.ne.s32.totalorder %s224, %s226
    %p230 = scmp.eq.s32.totalorder %s19, 0
    %p231 = por %p229, %p230
    %p232 = scmp.ne.s32.totalorder %s224, %s226
    %p233 = scmp.eq.s32.totalorder %s24, 3
    %p234 = por %p232, %p233
    %p235 = scmp.ne.s32.totalorder %s226, %s227
    %p236 = scmp.eq.s32.totalorder %s24, 0
    %p237 = por %p235, %p236
    %p238 = scmp.ne.s32.totalorder %s226, %s227
    %p239 = scmp.eq.s32.totalorder %s25, 3
    %p240 = por %p238, %p239
    %p242 = scmp.ne.s32.totalorder %s227, %s241
    %p243 = scmp.eq.s32.totalorder %s25, 0
    %p244 = por %p242, %p243
    %s246 = sadd.s32 %s245, 1
    %p249 = scmp.eq.s32.totalorder %s19, 3
    %p250 = scmp.ne.s32.totalorder %s245, %s247
    %p251 = scmp.eq.s32.totalorder %s19, 0
    %p252 = por %p250, %p251
    %p253 = scmp.ne.s32.totalorder %s245, %s247
    %p254 = scmp.eq.s32.totalorder %s24, 3
    %p255 = por %p253, %p254
    %p256 = scmp.ne.s32.totalorder %s247, %s248
    %p257 = scmp.eq.s32.totalorder %s24, 0
    %p258 = por %p256, %p257
    %p259 = scmp.ne.s32.totalorder %s247, %s248
    %p260 = scmp.eq.s32.totalorder %s25, 3
    %p261 = por %p259, %p260
    %p263 = scmp.ne.s32.totalorder %s248, %s262
    %p264 = scmp.eq.s32.totalorder %s25, 0
    %p265 = por %p263, %p264
    %s267 = sadd.s32 %s266, 1
    %p270 = scmp.eq.s32.totalorder %s19, 3
    %p271 = scmp.ne.s32.totalorder %s266, %s268
    %p272 = scmp.eq.s32.totalorder %s19, 0
    %p273 = por %p271, %p272
    %p274 = scmp.ne.s32.totalorder %s266, %s268
    %p275 = scmp.eq.s32.totalorder %s24, 3
    %p276 = por %p274, %p275
    %p277 = scmp.ne.s32.totalorder %s268, %s269
    %p278 = scmp.eq.s32.totalorder %s24, 0
    %p279 = por %p277, %p278
    %p280 = scmp.ne.s32.totalorder %s268, %s269
    %p281 = scmp.eq.s32.totalorder %s25, 3
    %p282 = por %p280, %p281
    %p284 = scmp.ne.s32.totalorder %s269, %s283
    %p285 = scmp.eq.s32.totalorder %s25, 0
    %p286 = por %p284, %p285
    %s288 = sadd.s32 %s287, 1
    %p291 = scmp.eq.s32.totalorder %s19, 3
    %p292 = scmp.ne.s32.totalorder %s287, %s289
    %p293 = scmp.eq.s32.totalorder %s19, 0
    %p294 = por %p292, %p293
    %p295 = scmp.ne.s32.totalorder %s287, %s289
    %p296 = scmp.eq.s32.totalorder %s24, 3
    %p297 = por %p295, %p296
    %p298 = scmp.ne.s32.totalorder %s289, %s290
    %p299 = scmp.eq.s32.totalorder %s24, 0
    %p300 = por %p298, %p299
    %p301 = scmp.ne.s32.totalorder %s289, %s290
    %p302 = scmp.eq.s32.totalorder %s25, 3
    %p303 = por %p301, %p302
    %p305 = scmp.ne.s32.totalorder %s290, %s304
    %p306 = scmp.eq.s32.totalorder %s25, 0
    %p307 = por %p305, %p306
    %s309 = sadd.s32 %s308, 1
    %p312 = scmp.eq.s32.totalorder %s19, 3
    %p313 = scmp.ne.s32.totalorder %s308, %s310
    %p314 = scmp.eq.s32.totalorder %s19, 0
    %p315 = por %p313, %p314
    %p316 = scmp.ne.s32.totalorder %s308, %s310
    %p317 = scmp.eq.s32.totalorder %s24, 3
    %p318 = por %p316, %p317
    %p319 = scmp.ne.s32.totalorder %s310, %s311
    %p320 = scmp.eq.s32.totalorder %s24, 0
    %p321 = por %p319, %p320
    %p322 = scmp.ne.s32.totalorder %s310, %s311
    %p323 = scmp.eq.s32.totalorder %s25, 3
    %p324 = por %p322, %p323
    %p326 = scmp.ne.s32.totalorder %s311, %s325
    %p327 = scmp.eq.s32.totalorder %s25, 0
    %p328 = por %p326, %p327
    %s329 = ssub.s32 %s26, %s38
    %s330 = ssub.s32 %s27, %s34
    %s331 = sor.u32 %s329, %s330
    %p332 = scmp.eq.s32.totalorder %s331, 0
    %s334 = sadd.s32 %s333, 1
    %s335 = scalar_select %p332, %s333, %s334
    %p338 = pneg %p332
    %p339 = scmp.eq.s32.totalorder %s19, 3
    %p340 = por %p338, %p339
    %p341 = scmp.ne.s32.totalorder %s333, %s336
    %p342 = scmp.eq.s32.totalorder %s19, 0
    %p343 = por %p341, %p342
    %p344 = scmp.ne.s32.totalorder %s333, %s336
    %p345 = scmp.eq.s32.totalorder %s24, 3
    %p346 = por %p344, %p345
    %p347 = scmp.ne.s32.totalorder %s336, %s337
    %p348 = scmp.eq.s32.totalorder %s24, 0
    %p349 = por %p347, %p348
    %p350 = scmp.ne.s32.totalorder %s336, %s337
    %p351 = scmp.eq.s32.totalorder %s25, 3
    %p352 = por %p350, %p351
    %p354 = scmp.ne.s32.totalorder %s337, %s353
    %p355 = scmp.eq.s32.totalorder %s25, 0
    %p356 = por %p354, %p355
    %p357 = scmp.le.s32.totalorder 1, %s19
    %p358 = scmp.lt.s32.totalorder %s19, 5
    %p359 = pnand %p357, %p358
    %p360 = pneg %p359
    // Predicated region
    $region9: #{tpu_custom_call.1} parent=5 // pred_check
      _
    $region10: #{tpu_custom_call.1} parent=5 // pred_check_branch
      %362 = sbr.rel (%p359) target = $region12
    $region11: #{tpu_custom_call.1} parent=5 // pred_region
      %s363 = ssub.s32 %s19, 1
      // Predicated region
      $region13: #{tpu_custom_call.1} parent=11 // pred_check
        %p364 = pneg %p85
      $region14: #{tpu_custom_call.1} parent=11 // pred_check_branch
        %366 = sbr.rel (%p364) target = $region16
      $region15: #{tpu_custom_call.1} parent=11 // pred_region
        %p367 = scmp.lt.s32.totalorder %s28, 1
        %s368 = scalar_select %p367, %s28, 1
        %s369 = smul.addr %s368, 2
        %s370 = scalar_lea.vmem %s1, %s369
      $region16: #{tpu_custom_call.1} parent=11 // pred_fallthru
        _
      // Predicated region
      $region17: #{tpu_custom_call.1} parent=11 // pred_check
        %p371 = pneg %p111
      $region18: #{tpu_custom_call.1} parent=11 // pred_check_branch
        %373 = sbr.rel (%p371) target = $region20
      $region19: #{tpu_custom_call.1} parent=11 // pred_region
        %p374 = scmp.lt.s32.totalorder %s28, 1
        %s375 = scalar_select %p374, %s28, 1
        %s376 = smul.addr %s375, 16
        %s377 = smul.addr %s376, 4
        %s378 = scalar_lea.vmem %s2, %s377
      $region20: #{tpu_custom_call.1} parent=11 // pred_fallthru
        _
      // Predicated region
      $region21: #{tpu_custom_call.1} parent=11 // pred_check
        %p379 = pneg %p132
      $region22: #{tpu_custom_call.1} parent=11 // pred_check_branch
        %381 = sbr.rel (%p379) target = $region24
      $region23: #{tpu_custom_call.1} parent=11 // pred_region
        _
      $region24: #{tpu_custom_call.1} parent=11 // pred_fallthru
        _
      // Predicated region
      $region25: #{tpu_custom_call.1} parent=11 // pred_check
        %p382 = pneg %p153
      $region26: #{tpu_custom_call.1} parent=11 // pred_check_branch
        %384 = sbr.rel (%p382) target = $region28
      $region27: #{tpu_custom_call.1} parent=11 // pred_region
        _
      $region28: #{tpu_custom_call.1} parent=11 // pred_fallthru
        _
      // Predicated region
      $region29: #{tpu_custom_call.1} parent=11 // pred_check
        %p385 = pneg %p174
      $region30: #{tpu_custom_call.1} parent=11 // pred_check_branch
        %387 = sbr.rel (%p385) target = $region32
      $region31: #{tpu_custom_call.1} parent=11 // pred_region
        _
      $region32: #{tpu_custom_call.1} parent=11 // pred_fallthru
        _
      // Predicated region
      $region33: #{tpu_custom_call.1} parent=11 // pred_check
        %p388 = pneg %p195
      $region34: #{tpu_custom_call.1} parent=11 // pred_check_branch
        %390 = sbr.rel (%p388) target = $region36
      $region35: #{tpu_custom_call.1} parent=11 // pred_region
        _
      $region36: #{tpu_custom_call.1} parent=11 // pred_fallthru
        _
      // Predicated region
      $region37: #{tpu_custom_call.1} parent=11 // pred_check
        %p391 = pneg %p216
      $region38: #{tpu_custom_call.1} parent=11 // pred_check_branch
        %393 = sbr.rel (%p391) target = $region40
      $region39: #{tpu_custom_call.1} parent=11 // pred_region
        _
      $region40: #{tpu_custom_call.1} parent=11 // pred_fallthru
        _
      // Predicated region
      $region41: #{tpu_custom_call.1} parent=11 // pred_check
        %p394 = pneg %p237
      $region42: #{tpu_custom_call.1} parent=11 // pred_check_branch
        %396 = sbr.rel (%p394) target = $region44
      $region43: #{tpu_custom_call.1} parent=11 // pred_region
        _
      $region44: #{tpu_custom_call.1} parent=11 // pred_fallthru
        _
      // Predicated region
      $region45: #{tpu_custom_call.1} parent=11 // pred_check
        %p397 = pneg %p258
      $region46: #{tpu_custom_call.1} parent=11 // pred_check_branch
        %399 = sbr.rel (%p397) target = $region48
      $region47: #{tpu_custom_call.1} parent=11 // pred_region
        _
      $region48: #{tpu_custom_call.1} parent=11 // pred_fallthru
        _
      // Predicated region
      $region49: #{tpu_custom_call.1} parent=11 // pred_check
        %p400 = pneg %p279
      $region50: #{tpu_custom_call.1} parent=11 // pred_check_branch
        %402 = sbr.rel (%p400) target = $region52
      $region51: #{tpu_custom_call.1} parent=11 // pred_region
        _
      $region52: #{tpu_custom_call.1} parent=11 // pred_fallthru
        _
      // Predicated region
      $region53: #{tpu_custom_call.1} parent=11 // pred_check
        %p403 = pneg %p300
      $region54: #{tpu_custom_call.1} parent=11 // pred_check_branch
        %405 = sbr.rel (%p403) target = $region56
      $region55: #{tpu_custom_call.1} parent=11 // pred_region
        _
      $region56: #{tpu_custom_call.1} parent=11 // pred_fallthru
        _
      // Predicated region
      $region57: #{tpu_custom_call.1} parent=11 // pred_check
        %p406 = pneg %p321
      $region58: #{tpu_custom_call.1} parent=11 // pred_check_branch
        %408 = sbr.rel (%p406) target = $region60
      $region59: #{tpu_custom_call.1} parent=11 // pred_region
        _
      $region60: #{tpu_custom_call.1} parent=11 // pred_fallthru
        _
    $region12: #{tpu_custom_call.1} parent=5 // pred_fallthru
      _
    %p409 = scmp.lt.s32.totalorder %s19, 4
    // Predicated region
    $region61: #{tpu_custom_call.1} parent=5 // pred_check
      %p410 = pneg %p409
    $region62: #{tpu_custom_call.1} parent=5 // pred_check_branch
      %412 = sbr.rel (%p410) target = $region64
    $region63: #{tpu_custom_call.1} parent=5 // pred_region
      // Predicated region
      $region65: #{tpu_custom_call.1} parent=63 // pred_check
        %p413 = pneg %p53
      $region66: #{tpu_custom_call.1} parent=63 // pred_check_branch
        %415 = sbr.rel (%p413) target = $region68
      $region67: #{tpu_custom_call.1} parent=63 // pred_region
        %s416 = smul.u32 16, %s27
        %p417 = scmp.lt.s32.totalorder %s26, 1
        %s418 = scalar_select %p417, %s26, 1
        %p419 = scmp.lt.s32.totalorder %s416, 31
        %s420 = scalar_select %p419, %s416, 31
        %s421 = smul.addr %s418, 32
        %s422 = sadd.s32 %s420, %s421
        %s423 = smul.addr %s422, 4
        %s424 = scalar_lea.vmem %s0, %s423
        %s425 = smul.u32 16, %s27
      $region68: #{tpu_custom_call.1} parent=63 // pred_fallthru
        _
    $region64: #{tpu_custom_call.1} parent=5 // pred_fallthru
      _
    %p426 = scmp.le.s32.totalorder 1, %s19
    %p427 = scmp.lt.s32.totalorder %s19, 5
    %p428 = pnand %p426, %p427
    %p429 = pneg %p428
    // Predicated region
    $region69: #{tpu_custom_call.1} parent=5 // pred_check
      _
    $region70: #{tpu_custom_call.1} parent=5 // pred_check_branch
      %431 = sbr.rel (%p428) target = $region72
    $region71: #{tpu_custom_call.1} parent=5 // pred_region
      %s432 = ssub.s32 %s19, 1
      %s433 = smul.u32 16, %s29
      %p434 = scmp.lt.s32.totalorder %s28, 1
      %s435 = scalar_select %p434, %s28, 1
      %p436 = scmp.lt.s32.totalorder %s433, 31
      %s437 = scalar_select %p436, %s433, 31
      %s438 = smul.addr %s435, 32
      %s439 = sadd.s32 %s437, %s438
      %s440 = smul.addr %s439, 4
      %s441 = scalar_lea.vmem %s0, %s440
      %p442 = pneg %p59
      %p443 = pneg %p56
      %p444 = scmp.lt.s32.totalorder %s28, 1
      %s445 = scalar_select %p444, %s28, 1
      %s446 = smul.addr %s445, 2
      %s447 = scalar_lea.vmem %s1, %s446
      %p448 = pneg %p85
      %p449 = pneg %p82
      %p450 = scmp.lt.s32.totalorder %s28, 1
      %s451 = scalar_select %p450, %s28, 1
      %s452 = smul.addr %s451, 16
      %s453 = smul.addr %s452, 4
      %s454 = scalar_lea.vmem %s2, %s453
      %p455 = pneg %p111
      %p456 = pneg %p108
      %p457 = pneg %p132
      %p458 = pneg %p129
      %p459 = pneg %p153
      %p460 = pneg %p150
      %p461 = pneg %p174
      %p462 = pneg %p171
      %p463 = pneg %p195
      %p464 = pneg %p192
      %p465 = pneg %p216
      %p466 = pneg %p213
      %p467 = pneg %p237
      %p468 = pneg %p234
      %p469 = pneg %p258
      %p470 = pneg %p255
      %p471 = pneg %p279
      %p472 = pneg %p276
      %p473 = pneg %p300
      %p474 = pneg %p297
      %p475 = pneg %p321
      %p476 = pneg %p318
      %p477 = pneg %p349
      %p478 = pneg %p346
      %s479 = smul.u32 16, %s29
      %p480 = scmp.lt.s32.totalorder %s28, 1
      %s481 = scalar_select %p480, %s28, 1
      %p482 = scmp.lt.s32.totalorder %s479, 31
      %s483 = scalar_select %p482, %s479, 31
      %s484 = smul.addr %s481, 32
      %s485 = sadd.s32 %s483, %s484
      %s486 = smul.addr %s485, 4
      %s487 = scalar_lea.vmem %s13, %s486
      %s488 = smul.u32 16, %s29
      %p489 = scmp.lt.s32.totalorder %s28, 1
      %s490 = scalar_select %p489, %s28, 1
      %p491 = scmp.lt.s32.totalorder %s488, 31
      %s492 = scalar_select %p491, %s488, 31
      %s493 = smul.addr %s490, 32
      %s494 = sadd.s32 %s492, %s493
      %s495 = smul.addr %s494, 4
      %s496 = scalar_lea.vmem %s0, %s495
      %s497 = smul.u32 16, %s29
      %p498 = scmp.lt.s32.totalorder %s28, 1
      %s499 = scalar_select %p498, %s28, 1
      %s500 = smul.addr %s499, 2
      %s501 = scalar_lea.vmem %s1, %s500
      %p502 = scmp.lt.s32.totalorder %s28, 1
      %s503 = scalar_select %p502, %s28, 1
      %s504 = smul.addr %s503, 16
      %s505 = smul.addr %s504, 4
      %s506 = scalar_lea.vmem %s2, %s505
      %s507 = smul.u32 16, %s29
      %p508 = scmp.lt.s32.totalorder %s28, 1
      %s509 = scalar_select %p508, %s28, 1
      %p510 = scmp.lt.s32.totalorder %s507, 31
      %s511 = scalar_select %p510, %s507, 31
      %s512 = smul.addr %s509, 32
      %s513 = sadd.s32 %s511, %s512
      %s514 = smul.addr %s513, 4
      %s515 = scalar_lea.vmem %s13, %s514
      %s516 = smul.u32 16, %s29
      %v518 = vld [vmem:[%s496] sm:$0xf]
      %v519 = vld [vmem:[%s496 + $0x4] sm:$0xf]
      %v520 = vld [vmem:[%s496 + $0x8] sm:$0xf]
      %v521 = vld [vmem:[%s496 + $0xc] sm:$0xf]
      %v522 = vld [vmem:[%s496 + $0x10] sm:$0xf]
      %v523 = vld [vmem:[%s496 + $0x14] sm:$0xf]
      %v524 = vld [vmem:[%s496 + $0x18] sm:$0xf]
      %v525 = vld [vmem:[%s496 + $0x1c] sm:$0xf]
      %v526 = vld [vmem:[%s496 + $0x20] sm:$0xf]
      %v527 = vld [vmem:[%s496 + $0x24] sm:$0xf]
      %v528 = vld [vmem:[%s496 + $0x28] sm:$0xf]
      %v529 = vld [vmem:[%s496 + $0x2c] sm:$0xf]
      %v530 = vld [vmem:[%s496 + $0x30] sm:$0xf]
      %v531 = vld [vmem:[%s496 + $0x34] sm:$0xf]
      %v532 = vld [vmem:[%s496 + $0x38] sm:$0xf]
      %v533 = vld [vmem:[%s496 + $0x3c] sm:$0xf]
      %v534 = vld [vmem:[%s4] sm:$0xf]
      %v535 = vld [vmem:[%s5] sm:$0x1]
      %v537 = vlaneseq
      %v538 = vshrl.u32 %v537, 7
      %v539 = vsub.s32 0, %v538
      %v540 = vrot.slane %v535, %v539
      %v558 = vunpack.c.l.b16 %v518
      %v559 = vunpack.c.l.b16 %v519
      %v560 = vunpack.c.l.b16 %v520
      %v561 = vunpack.c.l.b16 %v521
      %v562 = vunpack.c.l.b16 %v522
      %v563 = vunpack.c.l.b16 %v523
      %v564 = vunpack.c.l.b16 %v524
      %v565 = vunpack.c.l.b16 %v525
      %v566 = vunpack.c.l.b16 %v526
      %v567 = vunpack.c.l.b16 %v527
      %v568 = vunpack.c.l.b16 %v528
      %v569 = vunpack.c.l.b16 %v529
      %v570 = vunpack.c.l.b16 %v530
      %v571 = vunpack.c.l.b16 %v531
      %v572 = vunpack.c.l.b16 %v532
      %v573 = vunpack.c.l.b16 %v533
      %v574 = vpack.c.b16 %v559, %v558
      %v575 = vpack.c.b16 %v561, %v560
      %v576 = vpack.c.b16 %v563, %v562
      %v577 = vpack.c.b16 %v565, %v564
      %v578 = vpack.c.b16 %v567, %v566
      %v579 = vpack.c.b16 %v569, %v568
      %v580 = vpack.c.b16 %v571, %v570
      %v581 = vpack.c.b16 %v573, %v572
      %vm582 = vcmask 64512
      %v584 = vsel %vm582, %v574, 0
      %v587 = vsel %vm582, %v575, 0
      %v590 = vsel %vm582, %v576, 0
      %v593 = vsel %vm582, %v577, 0
      %v596 = vsel %vm582, %v578, 0
      %v599 = vsel %vm582, %v579, 0
      %v602 = vsel %vm582, %v580, 0
      %v605 = vsel %vm582, %v581, 0
      %vm607 = vcmask 1043456
      %v609 = vsel %vm607, %v534, 0
      %611 = vmatprep.subr.bf16.mxu0 0
      %612 = vmatpush1.bf16.msra.mxu0 0
      %613 = vmatprep.subr.bf16.mxu0 0
      %614 = vmatpush1.bf16.msra.mxu0 0
      %615 = vmatprep.subr.bf16.mxu0 0
      %616 = vmatpush1.bf16.msra.mxu0 0
      %617 = vmatprep.subr.bf16.mxu0 0
      %618 = vmatpush1.bf16.msra.mxu0 0
      %619 = vmatprep.subr.bf16.mxu0 0
      %620 = vmatpush1.bf16.msra.mxu0 0
      %621 = vmatprep.subr.bf16.mxu0 0
      %622 = vmatpush1.bf16.msra.mxu0 0
      %623 = vmatprep.subr.bf16.mxu0 0
      %624 = vmatpush1.bf16.msra.mxu0 0
      %625 = vmatprep.subr.bf16.mxu0 0
      %626 = vmatpush1.bf16.msra.mxu0 %v609
      %627 = vmatprep.subr.bf16.mxu0 0
      %628 = vmatpush2.bf16.msra.mxu0 0
      %629 = vmatprep.subr.bf16.mxu0 0
      %630 = vmatpush2.bf16.msra.mxu0 0
      %631 = vmatprep.subr.bf16.mxu0 0
      %632 = vmatpush2.bf16.msra.mxu0 0
      %633 = vmatprep.subr.bf16.mxu0 0
      %634 = vmatpush2.bf16.msra.mxu0 0
      %635 = vmatprep.subr.bf16.mxu0 0
      %636 = vmatpush2.bf16.msra.mxu0 0
      %637 = vmatprep.subr.bf16.mxu0 0
      %638 = vmatpush2.bf16.msra.mxu0 0
      %639 = vmatprep.subr.bf16.mxu0 0
      %640 = vmatpush2.bf16.msra.mxu0 0
      %641 = vmatprep.subr.bf16.mxu0 0
      %642 = vmatpush2.bf16.msra.mxu0 0
      %643 = vmatprep.mubr.bf16.mxu0 0
      %644 = vmatmul.mubr.bf16.gmra.mxu0 %v584
      %v645 = vpop.f32.mrf.mxu0
      %v646 = vadd.f32 %v540, %v645
      %v647 = vpop.f32.mrf.mxu0
      %v648 = vpop.f32.mrf.mxu0
      %v649 = vadd.f32 %v540, %v648
      %v650 = vpop.f32.mrf.mxu0
      %651 = vmatprep.mubr.bf16.mxu0 0
      %652 = vmatmul.mubr.bf16.gmra.mxu0 %v587
      %v653 = vpop.f32.mrf.mxu0
      %v654 = vadd.f32 %v540, %v653
      %v655 = vpop.f32.mrf.mxu0
      %v656 = vpop.f32.mrf.mxu0
      %v657 = vadd.f32 %v540, %v656
      %v658 = vpop.f32.mrf.mxu0
      %659 = vmatprep.mubr.bf16.mxu0 0
      %660 = vmatmul.mubr.bf16.gmra.mxu0 %v590
      %v661 = vpop.f32.mrf.mxu0
      %v662 = vadd.f32 %v540, %v661
      %v663 = vpop.f32.mrf.mxu0
      %v664 = vpop.f32.mrf.mxu0
      %v665 = vadd.f32 %v540, %v664
      %v666 = vpop.f32.mrf.mxu0
      %667 = vmatprep.mubr.bf16.mxu0 0
      %668 = vmatmul.mubr.bf16.gmra.mxu0 %v593
      %v669 = vpop.f32.mrf.mxu0
      %v670 = vadd.f32 %v540, %v669
      %v671 = vpop.f32.mrf.mxu0
      %v672 = vpop.f32.mrf.mxu0
      %v673 = vadd.f32 %v540, %v672
      %v674 = vpop.f32.mrf.mxu0
      %675 = vmatprep.mubr.bf16.mxu0 0
      %676 = vmatmul.mubr.bf16.gmra.mxu0 %v596
      %v677 = vpop.f32.mrf.mxu0
      %v678 = vadd.f32 %v540, %v677
      %v679 = vpop.f32.mrf.mxu0
      %v680 = vpop.f32.mrf.mxu0
      %v681 = vadd.f32 %v540, %v680
      %v682 = vpop.f32.mrf.mxu0
      %683 = vmatprep.mubr.bf16.mxu0 0
      %684 = vmatmul.mubr.bf16.gmra.mxu0 %v599
      %v685 = vpop.f32.mrf.mxu0
      %v686 = vadd.f32 %v540, %v685
      %v687 = vpop.f32.mrf.mxu0
      %v688 = vpop.f32.mrf.mxu0
      %v689 = vadd.f32 %v540, %v688
      %v690 = vpop.f32.mrf.mxu0
      %691 = vmatprep.mubr.bf16.mxu0 0
      %692 = vmatmul.mubr.bf16.gmra.mxu0 %v602
      %v693 = vpop.f32.mrf.mxu0
      %v694 = vadd.f32 %v540, %v693
      %v695 = vpop.f32.mrf.mxu0
      %v696 = vpop.f32.mrf.mxu0
      %v697 = vadd.f32 %v540, %v696
      %v698 = vpop.f32.mrf.mxu0
      %699 = vmatprep.mubr.bf16.mxu0 0
      %700 = vmatmul.mubr.bf16.gmra.mxu0 %v605
      %v701 = vpop.f32.mrf.mxu0
      %v702 = vadd.f32 %v540, %v701
      %v703 = vpop.f32.mrf.mxu0
      %v704 = vpop.f32.mrf.mxu0
      %v705 = vadd.f32 %v540, %v704
      %v706 = vpop.f32.mrf.mxu0
      %707 = vdwg.mxu0
      %v708 = vmax.f32 %v646, 0.0
      %v709 = vmax.f32 %v649, 0.0
      %v710 = vmax.f32 %v654, 0.0
      %v711 = vmax.f32 %v657, 0.0
      %v712 = vmax.f32 %v662, 0.0
      %v713 = vmax.f32 %v665, 0.0
      %v714 = vmax.f32 %v670, 0.0
      %v715 = vmax.f32 %v673, 0.0
      %v716 = vmax.f32 %v678, 0.0
      %v717 = vmax.f32 %v681, 0.0
      %v718 = vmax.f32 %v686, 0.0
      %v719 = vmax.f32 %v689, 0.0
      %v720 = vmax.f32 %v694, 0.0
      %v721 = vmax.f32 %v697, 0.0
      %v722 = vmax.f32 %v702, 0.0
      %v723 = vmax.f32 %v705, 0.0
      %v724 = vpack.c.bf16 %v709, %v708
      %v725 = vpack.c.bf16 %v711, %v710
      %v726 = vpack.c.bf16 %v713, %v712
      %v727 = vpack.c.bf16 %v715, %v714
      %v728 = vpack.c.bf16 %v717, %v716
      %v729 = vpack.c.bf16 %v719, %v718
      %v730 = vpack.c.bf16 %v721, %v720
      %v731 = vpack.c.bf16 %v723, %v722
      %v732 = vld [vmem:[%s6] sm:$0x3]
      %v733 = vld [vmem:[%s7] sm:$0x1]
      %v735 = vlaneseq
      %v736 = vshrl.u32 %v735, 7
      %v737 = vsub.s32 0, %v736
      %v738 = vrot.slane %v733, %v737
      %vm740 = vcmask 31744
      %v742 = vsel %vm740, %v724, 0
      %v745 = vsel %vm740, %v725, 0
      %v748 = vsel %vm740, %v726, 0
      %v751 = vsel %vm740, %v727, 0
      %v754 = vsel %vm740, %v728, 0
      %v757 = vsel %vm740, %v729, 0
      %v760 = vsel %vm740, %v730, 0
      %v763 = vsel %vm740, %v731, 0
      %vm765 = vcmask 1041408
      %v767 = vsel %vm765, %v732, 0
      %769 = vmatprep.subr.bf16.mxu0 0
      %770 = vmatpush1.bf16.msra.mxu0 0
      %771 = vmatprep.subr.bf16.mxu0 0
      %772 = vmatpush1.bf16.msra.mxu0 0
      %773 = vmatprep.subr.bf16.mxu0 0
      %774 = vmatpush1.bf16.msra.mxu0 0
      %775 = vmatprep.subr.bf16.mxu0 0
      %776 = vmatpush1.bf16.msra.mxu0 0
      %777 = vmatprep.subr.bf16.mxu0 0
      %778 = vmatpush1.bf16.msra.mxu0 0
      %779 = vmatprep.subr.bf16.mxu0 0
      %780 = vmatpush1.bf16.msra.mxu0 0
      %781 = vmatprep.subr.bf16.mxu0 0
      %782 = vmatpush1.bf16.msra.mxu0 0
      %783 = vmatprep.subr.bf16.mxu0 0
      %784 = vmatpush1.bf16.msra.mxu0 %v767
      %785 = vmatprep.subr.bf16.mxu0 0
      %786 = vmatpush2.bf16.msra.mxu0 0
      %787 = vmatprep.subr.bf16.mxu0 0
      %788 = vmatpush2.bf16.msra.mxu0 0
      %789 = vmatprep.subr.bf16.mxu0 0
      %790 = vmatpush2.bf16.msra.mxu0 0
      %791 = vmatprep.subr.bf16.mxu0 0
      %792 = vmatpush2.bf16.msra.mxu0 0
      %793 = vmatprep.subr.bf16.mxu0 0
      %794 = vmatpush2.bf16.msra.mxu0 0
      %795 = vmatprep.subr.bf16.mxu0 0
      %796 = vmatpush2.bf16.msra.mxu0 0
      %797 = vmatprep.subr.bf16.mxu0 0
      %798 = vmatpush2.bf16.msra.mxu0 0
      %799 = vmatprep.subr.bf16.mxu0 0
      %800 = vmatpush2.bf16.msra.mxu0 0
      %801 = vmatprep.mubr.bf16.mxu0 0
      %802 = vmatmul.mubr.bf16.gmra.mxu0 %v742
      %v803 = vpop.f32.mrf.mxu0
      %v804 = vadd.f32 %v738, %v803
      %v805 = vpop.f32.mrf.mxu0
      %v806 = vpop.f32.mrf.mxu0
      %v807 = vadd.f32 %v738, %v806
      %v808 = vpop.f32.mrf.mxu0
      %809 = vmatprep.mubr.bf16.mxu0 0
      %810 = vmatmul.mubr.bf16.gmra.mxu0 %v745
      %v811 = vpop.f32.mrf.mxu0
      %v812 = vadd.f32 %v738, %v811
      %v813 = vpop.f32.mrf.mxu0
      %v814 = vpop.f32.mrf.mxu0
      %v815 = vadd.f32 %v738, %v814
      %v816 = vpop.f32.mrf.mxu0
      %817 = vmatprep.mubr.bf16.mxu0 0
      %818 = vmatmul.mubr.bf16.gmra.mxu0 %v748
      %v819 = vpop.f32.mrf.mxu0
      %v820 = vadd.f32 %v738, %v819
      %v821 = vpop.f32.mrf.mxu0
      %v822 = vpop.f32.mrf.mxu0
      %v823 = vadd.f32 %v738, %v822
      %v824 = vpop.f32.mrf.mxu0
      %825 = vmatprep.mubr.bf16.mxu0 0
      %826 = vmatmul.mubr.bf16.gmra.mxu0 %v751
      %v827 = vpop.f32.mrf.mxu0
      %v828 = vadd.f32 %v738, %v827
      %v829 = vpop.f32.mrf.mxu0
      %v830 = vpop.f32.mrf.mxu0
      %v831 = vadd.f32 %v738, %v830
      %v832 = vpop.f32.mrf.mxu0
      %833 = vmatprep.mubr.bf16.mxu0 0
      %834 = vmatmul.mubr.bf16.gmra.mxu0 %v754
      %v835 = vpop.f32.mrf.mxu0
      %v836 = vadd.f32 %v738, %v835
      %v837 = vpop.f32.mrf.mxu0
      %v838 = vpop.f32.mrf.mxu0
      %v839 = vadd.f32 %v738, %v838
      %v840 = vpop.f32.mrf.mxu0
      %841 = vmatprep.mubr.bf16.mxu0 0
      %842 = vmatmul.mubr.bf16.gmra.mxu0 %v757
      %v843 = vpop.f32.mrf.mxu0
      %v844 = vadd.f32 %v738, %v843
      %v845 = vpop.f32.mrf.mxu0
      %v846 = vpop.f32.mrf.mxu0
      %v847 = vadd.f32 %v738, %v846
      %v848 = vpop.f32.mrf.mxu0
      %849 = vmatprep.mubr.bf16.mxu0 0
      %850 = vmatmul.mubr.bf16.gmra.mxu0 %v760
      %v851 = vpop.f32.mrf.mxu0
      %v852 = vadd.f32 %v738, %v851
      %v853 = vpop.f32.mrf.mxu0
      %v854 = vpop.f32.mrf.mxu0
      %v855 = vadd.f32 %v738, %v854
      %v856 = vpop.f32.mrf.mxu0
      %857 = vmatprep.mubr.bf16.mxu0 0
      %858 = vmatmul.mubr.bf16.gmra.mxu0 %v763
      %v859 = vpop.f32.mrf.mxu0
      %v860 = vadd.f32 %v738, %v859
      %v861 = vpop.f32.mrf.mxu0
      %v862 = vpop.f32.mrf.mxu0
      %v863 = vadd.f32 %v738, %v862
      %v864 = vpop.f32.mrf.mxu0
      %865 = vdwg.mxu0
      %v866 = vmax.f32 %v804, 0.0
      %v867 = vmax.f32 %v807, 0.0
      %v868 = vmax.f32 %v812, 0.0
      %v869 = vmax.f32 %v815, 0.0
      %v870 = vmax.f32 %v820, 0.0
      %v871 = vmax.f32 %v823, 0.0
      %v872 = vmax.f32 %v828, 0.0
      %v873 = vmax.f32 %v831, 0.0
      %v874 = vmax.f32 %v836, 0.0
      %v875 = vmax.f32 %v839, 0.0
      %v876 = vmax.f32 %v844, 0.0
      %v877 = vmax.f32 %v847, 0.0
      %v878 = vmax.f32 %v852, 0.0
      %v879 = vmax.f32 %v855, 0.0
      %v880 = vmax.f32 %v860, 0.0
      %v881 = vmax.f32 %v863, 0.0
      %v882 = vpack.c.bf16 %v867, %v866
      %v883 = vpack.c.bf16 %v869, %v868
      %v884 = vpack.c.bf16 %v871, %v870
      %v885 = vpack.c.bf16 %v873, %v872
      %v886 = vpack.c.bf16 %v875, %v874
      %v887 = vpack.c.bf16 %v877, %v876
      %v888 = vpack.c.bf16 %v879, %v878
      %v889 = vpack.c.bf16 %v881, %v880
      %v890 = vld [vmem:[%s501] sm:$0x3]
      %v891 = vld [vmem:[%s3] sm:$0x1]
      %v893 = vlaneseq
      %v894 = vshrl.u32 %v893, 7
      %v895 = vsub.s32 0, %v894
      %v896 = vrot.slane %v891, %v895
      %v899 = vsel %vm740, %v882, 0
      %v902 = vsel %vm740, %v883, 0
      %v905 = vsel %vm740, %v884, 0
      %v908 = vsel %vm740, %v885, 0
      %v911 = vsel %vm740, %v886, 0
      %v914 = vsel %vm740, %v887, 0
      %v917 = vsel %vm740, %v888, 0
      %v920 = vsel %vm740, %v889, 0
      %v923 = vsel %vm765, %v890, 0
      %925 = vmatprep.subr.bf16.mxu0 0
      %926 = vmatpush1.bf16.msra.mxu0 0
      %927 = vmatprep.subr.bf16.mxu0 0
      %928 = vmatpush1.bf16.msra.mxu0 0
      %929 = vmatprep.subr.bf16.mxu0 0
      %930 = vmatpush1.bf16.msra.mxu0 0
      %931 = vmatprep.subr.bf16.mxu0 0
      %932 = vmatpush1.bf16.msra.mxu0 0
      %933 = vmatprep.subr.bf16.mxu0 0
      %934 = vmatpush1.bf16.msra.mxu0 0
      %935 = vmatprep.subr.bf16.mxu0 0
      %936 = vmatpush1.bf16.msra.mxu0 0
      %937 = vmatprep.subr.bf16.mxu0 0
      %938 = vmatpush1.bf16.msra.mxu0 0
      %939 = vmatprep.subr.bf16.mxu0 0
      %940 = vmatpush1.bf16.msra.mxu0 %v923
      %941 = vmatprep.subr.bf16.mxu0 0
      %942 = vmatpush2.bf16.msra.mxu0 0
      %943 = vmatprep.subr.bf16.mxu0 0
      %944 = vmatpush2.bf16.msra.mxu0 0
      %945 = vmatprep.subr.bf16.mxu0 0
      %946 = vmatpush2.bf16.msra.mxu0 0
      %947 = vmatprep.subr.bf16.mxu0 0
      %948 = vmatpush2.bf16.msra.mxu0 0
      %949 = vmatprep.subr.bf16.mxu0 0
      %950 = vmatpush2.bf16.msra.mxu0 0
      %951 = vmatprep.subr.bf16.mxu0 0
      %952 = vmatpush2.bf16.msra.mxu0 0
      %953 = vmatprep.subr.bf16.mxu0 0
      %954 = vmatpush2.bf16.msra.mxu0 0
      %955 = vmatprep.subr.bf16.mxu0 0
      %956 = vmatpush2.bf16.msra.mxu0 0
      %957 = vmatprep.mubr.bf16.mxu0 0
      %958 = vmatmul.mubr.bf16.gmra.mxu0 %v899
      %v959 = vpop.f32.mrf.mxu0
      %v960 = vadd.f32 %v896, %v959
      %v961 = vpop.f32.mrf.mxu0
      %v962 = vpop.f32.mrf.mxu0
      %v963 = vadd.f32 %v896, %v962
      %v964 = vpop.f32.mrf.mxu0
      %965 = vmatprep.mubr.bf16.mxu0 0
      %966 = vmatmul.mubr.bf16.gmra.mxu0 %v902
      %v967 = vpop.f32.mrf.mxu0
      %v968 = vadd.f32 %v896, %v967
      %v969 = vpop.f32.mrf.mxu0
      %v970 = vpop.f32.mrf.mxu0
      %v971 = vadd.f32 %v896, %v970
      %v972 = vpop.f32.mrf.mxu0
      %973 = vmatprep.mubr.bf16.mxu0 0
      %974 = vmatmul.mubr.bf16.gmra.mxu0 %v905
      %v975 = vpop.f32.mrf.mxu0
      %v976 = vadd.f32 %v896, %v975
      %v977 = vpop.f32.mrf.mxu0
      %v978 = vpop.f32.mrf.mxu0
      %v979 = vadd.f32 %v896, %v978
      %v980 = vpop.f32.mrf.mxu0
      %981 = vmatprep.mubr.bf16.mxu0 0
      %982 = vmatmul.mubr.bf16.gmra.mxu0 %v908
      %v983 = vpop.f32.mrf.mxu0
      %v984 = vadd.f32 %v896, %v983
      %v985 = vpop.f32.mrf.mxu0
      %v986 = vpop.f32.mrf.mxu0
      %v987 = vadd.f32 %v896, %v986
      %v988 = vpop.f32.mrf.mxu0
      %989 = vmatprep.mubr.bf16.mxu0 0
      %990 = vmatmul.mubr.bf16.gmra.mxu0 %v911
      %v991 = vpop.f32.mrf.mxu0
      %v992 = vadd.f32 %v896, %v991
      %v993 = vpop.f32.mrf.mxu0
      %v994 = vpop.f32.mrf.mxu0
      %v995 = vadd.f32 %v896, %v994
      %v996 = vpop.f32.mrf.mxu0
      %997 = vmatprep.mubr.bf16.mxu0 0
      %998 = vmatmul.mubr.bf16.gmra.mxu0 %v914
      %v999 = vpop.f32.mrf.mxu0
      %v1000 = vadd.f32 %v896, %v999
      %v1001 = vpop.f32.mrf.mxu0
      %v1002 = vpop.f32.mrf.mxu0
      %v1003 = vadd.f32 %v896, %v1002
      %v1004 = vpop.f32.mrf.mxu0
      %1005 = vmatprep.mubr.bf16.mxu0 0
      %1006 = vmatmul.mubr.bf16.gmra.mxu0 %v917
      %v1007 = vpop.f32.mrf.mxu0
      %v1008 = vadd.f32 %v896, %v1007
      %v1009 = vpop.f32.mrf.mxu0
      %v1010 = vpop.f32.mrf.mxu0
      %v1011 = vadd.f32 %v896, %v1010
      %v1012 = vpop.f32.mrf.mxu0
      %1013 = vmatprep.mubr.bf16.mxu0 0
      %1014 = vmatmul.mubr.bf16.gmra.mxu0 %v920
      %v1015 = vpop.f32.mrf.mxu0
      %v1016 = vadd.f32 %v896, %v1015
      %v1017 = vpop.f32.mrf.mxu0
      %v1018 = vpop.f32.mrf.mxu0
      %v1019 = vadd.f32 %v896, %v1018
      %v1020 = vpop.f32.mrf.mxu0
      %1021 = vdwg.mxu0
      %1022 = vmax.xlane.f32.xlu0 %v960
      %v1023 = vpop.xlane.xlu0 %1022
      %1024 = vmax.xlane.f32.xlu0 %v963
      %v1025 = vpop.xlane.xlu0 %1024
      %1026 = vmax.xlane.f32.xlu0 %v968
      %v1027 = vpop.xlane.xlu0 %1026
      %1028 = vmax.xlane.f32.xlu0 %v971
      %v1029 = vpop.xlane.xlu0 %1028
      %1030 = vmax.xlane.f32.xlu0 %v976
      %v1031 = vpop.xlane.xlu0 %1030
      %1032 = vmax.xlane.f32.xlu0 %v979
      %v1033 = vpop.xlane.xlu0 %1032
      %1034 = vmax.xlane.f32.xlu0 %v984
      %v1035 = vpop.xlane.xlu0 %1034
      %1036 = vmax.xlane.f32.xlu0 %v987
      %v1037 = vpop.xlane.xlu0 %1036
      %1038 = vmax.xlane.f32.xlu0 %v992
      %v1039 = vpop.xlane.xlu0 %1038
      %1040 = vmax.xlane.f32.xlu0 %v995
      %v1041 = vpop.xlane.xlu0 %1040
      %1042 = vmax.xlane.f32.xlu0 %v1000
      %v1043 = vpop.xlane.xlu0 %1042
      %1044 = vmax.xlane.f32.xlu0 %v1003
      %v1045 = vpop.xlane.xlu0 %1044
      %1046 = vmax.xlane.f32.xlu0 %v1008
      %v1047 = vpop.xlane.xlu0 %1046
      %1048 = vmax.xlane.f32.xlu0 %v1011
      %v1049 = vpop.xlane.xlu0 %1048
      %1050 = vmax.xlane.f32.xlu0 %v1016
      %v1051 = vpop.xlane.xlu0 %1050
      %1052 = vmax.xlane.f32.xlu0 %v1019
      %v1053 = vpop.xlane.xlu0 %1052
      %v1054 = vsub.f32 %v960, %v1023
      %v1055 = vsub.f32 %v963, %v1025
      %v1056 = vsub.f32 %v968, %v1027
      %v1057 = vsub.f32 %v971, %v1029
      %v1058 = vsub.f32 %v976, %v1031
      %v1059 = vsub.f32 %v979, %v1033
      %v1060 = vsub.f32 %v984, %v1035
      %v1061 = vsub.f32 %v987, %v1037
      %v1062 = vsub.f32 %v992, %v1039
      %v1063 = vsub.f32 %v995, %v1041
      %v1064 = vsub.f32 %v1000, %v1043
      %v1065 = vsub.f32 %v1003, %v1045
      %v1066 = vsub.f32 %v1008, %v1047
      %v1067 = vsub.f32 %v1011, %v1049
      %v1068 = vsub.f32 %v1016, %v1051
      %v1069 = vsub.f32 %v1019, %v1053
      %v1070 = vmul.f32 %v1054, 1.442695
      %v1071 = vpow.pop %v1070
      %v1072 = vmul.f32 %v1055, 1.442695
      %v1073 = vpow.pop %v1072
      %v1074 = vmul.f32 %v1056, 1.442695
      %v1075 = vpow.pop %v1074
      %v1076 = vmul.f32 %v1057, 1.442695
      %v1077 = vpow.pop %v1076
      %v1078 = vmul.f32 %v1058, 1.442695
      %v1079 = vpow.pop %v1078
      %v1080 = vmul.f32 %v1059, 1.442695
      %v1081 = vpow.pop %v1080
      %v1082 = vmul.f32 %v1060, 1.442695
      %v1083 = vpow.pop %v1082
      %v1084 = vmul.f32 %v1061, 1.442695
      %v1085 = vpow.pop %v1084
      %v1086 = vmul.f32 %v1062, 1.442695
      %v1087 = vpow.pop %v1086
      %v1088 = vmul.f32 %v1063, 1.442695
      %v1089 = vpow.pop %v1088
      %v1090 = vmul.f32 %v1064, 1.442695
      %v1091 = vpow.pop %v1090
      %v1092 = vmul.f32 %v1065, 1.442695
      %v1093 = vpow.pop %v1092
      %v1094 = vmul.f32 %v1066, 1.442695
      %v1095 = vpow.pop %v1094
      %v1096 = vmul.f32 %v1067, 1.442695
      %v1097 = vpow.pop %v1096
      %v1098 = vmul.f32 %v1068, 1.442695
      %v1099 = vpow.pop %v1098
      %v1100 = vmul.f32 %v1069, 1.442695
      %v1101 = vpow.pop %v1100
      %1102 = vadd.xlane.f32.xlu0 %v1071
      %v1103 = vpop.xlane.xlu0 %1102
      %1104 = vadd.xlane.f32.xlu0 %v1073
      %v1105 = vpop.xlane.xlu0 %1104
      %1106 = vadd.xlane.f32.xlu0 %v1075
      %v1107 = vpop.xlane.xlu0 %1106
      %1108 = vadd.xlane.f32.xlu0 %v1077
      %v1109 = vpop.xlane.xlu0 %1108
      %1110 = vadd.xlane.f32.xlu0 %v1079
      %v1111 = vpop.xlane.xlu0 %1110
      %1112 = vadd.xlane.f32.xlu0 %v1081
      %v1113 = vpop.xlane.xlu0 %1112
      %1114 = vadd.xlane.f32.xlu0 %v1083
      %v1115 = vpop.xlane.xlu0 %1114
      %1116 = vadd.xlane.f32.xlu0 %v1085
      %v1117 = vpop.xlane.xlu0 %1116
      %1118 = vadd.xlane.f32.xlu0 %v1087
      %v1119 = vpop.xlane.xlu0 %1118
      %1120 = vadd.xlane.f32.xlu0 %v1089
      %v1121 = vpop.xlane.xlu0 %1120
      %1122 = vadd.xlane.f32.xlu0 %v1091
      %v1123 = vpop.xlane.xlu0 %1122
      %1124 = vadd.xlane.f32.xlu0 %v1093
      %v1125 = vpop.xlane.xlu0 %1124
      %1126 = vadd.xlane.f32.xlu0 %v1095
      %v1127 = vpop.xlane.xlu0 %1126
      %1128 = vadd.xlane.f32.xlu0 %v1097
      %v1129 = vpop.xlane.xlu0 %1128
      %1130 = vadd.xlane.f32.xlu0 %v1099
      %v1131 = vpop.xlane.xlu0 %1130
      %1132 = vadd.xlane.f32.xlu0 %v1101
      %v1133 = vpop.xlane.xlu0 %1132
      %v1134 = vrcp.pop %v1103
      %v1135 = vrcp.pop %v1105
      %v1136 = vrcp.pop %v1107
      %v1137 = vrcp.pop %v1109
      %v1138 = vrcp.pop %v1111
      %v1139 = vrcp.pop %v1113
      %v1140 = vrcp.pop %v1115
      %v1141 = vrcp.pop %v1117
      %v1142 = vrcp.pop %v1119
      %v1143 = vrcp.pop %v1121
      %v1144 = vrcp.pop %v1123
      %v1145 = vrcp.pop %v1125
      %v1146 = vrcp.pop %v1127
      %v1147 = vrcp.pop %v1129
      %v1148 = vrcp.pop %v1131
      %v1149 = vrcp.pop %v1133
      %v1150 = vmul.f32 %v1071, %v1134
      %v1151 = vmul.f32 %v1073, %v1135
      %v1152 = vmul.f32 %v1075, %v1136
      %v1153 = vmul.f32 %v1077, %v1137
      %v1154 = vmul.f32 %v1079, %v1138
      %v1155 = vmul.f32 %v1081, %v1139
      %v1156 = vmul.f32 %v1083, %v1140
      %v1157 = vmul.f32 %v1085, %v1141
      %v1158 = vmul.f32 %v1087, %v1142
      %v1159 = vmul.f32 %v1089, %v1143
      %v1160 = vmul.f32 %v1091, %v1144
      %v1161 = vmul.f32 %v1093, %v1145
      %v1162 = vmul.f32 %v1095, %v1146
      %v1163 = vmul.f32 %v1097, %v1147
      %v1164 = vmul.f32 %v1099, %v1148
      %v1165 = vmul.f32 %v1101, %v1149
      %v1166 = vpack.c.bf16 %v1151, %v1150
      %v1167 = vpack.c.bf16 %v1153, %v1152
      %v1168 = vpack.c.bf16 %v1155, %v1154
      %v1169 = vpack.c.bf16 %v1157, %v1156
      %v1170 = vpack.c.bf16 %v1159, %v1158
      %v1171 = vpack.c.bf16 %v1161, %v1160
      %v1172 = vpack.c.bf16 %v1163, %v1162
      %v1173 = vpack.c.bf16 %v1165, %v1164
      %v1174 = vld [vmem:[%s506] sm:$0xf]
      %v1175 = vld [vmem:[%s506 + $0x4] sm:$0xf]
      %v1176 = vld [vmem:[%s506 + $0x8] sm:$0xf]
      %v1177 = vld [vmem:[%s506 + $0xc] sm:$0xf]
      %v1178 = vld [vmem:[%s506 + $0x10] sm:$0xf]
      %v1179 = vld [vmem:[%s506 + $0x14] sm:$0xf]
      %v1180 = vld [vmem:[%s506 + $0x18] sm:$0xf]
      %v1181 = vld [vmem:[%s506 + $0x1c] sm:$0xf]
      %v1182 = vld [vmem:[%s506 + $0x20] sm:$0xf]
      %v1183 = vld [vmem:[%s506 + $0x24] sm:$0xf]
      %v1184 = vld [vmem:[%s506 + $0x28] sm:$0xf]
      %v1185 = vld [vmem:[%s506 + $0x2c] sm:$0xf]
      %v1186 = vld [vmem:[%s506 + $0x30] sm:$0xf]
      %v1187 = vld [vmem:[%s506 + $0x34] sm:$0xf]
      %v1188 = vld [vmem:[%s506 + $0x38] sm:$0xf]
      %v1189 = vld [vmem:[%s506 + $0x3c] sm:$0xf]
      %v1206 = vunpack.c.l.b16 %v1174
      %v1207 = vunpack.c.l.b16 %v1175
      %v1208 = vunpack.c.l.b16 %v1176
      %v1209 = vunpack.c.l.b16 %v1177
      %v1210 = vunpack.c.l.b16 %v1178
      %v1211 = vunpack.c.l.b16 %v1179
      %v1212 = vunpack.c.l.b16 %v1180
      %v1213 = vunpack.c.l.b16 %v1181
      %v1214 = vunpack.c.l.b16 %v1182
      %v1215 = vunpack.c.l.b16 %v1183
      %v1216 = vunpack.c.l.b16 %v1184
      %v1217 = vunpack.c.l.b16 %v1185
      %v1218 = vunpack.c.l.b16 %v1186
      %v1219 = vunpack.c.l.b16 %v1187
      %v1220 = vunpack.c.l.b16 %v1188
      %v1221 = vunpack.c.l.b16 %v1189
      %v1222 = vpack.c.b16 %v1207, %v1206
      %v1223 = vpack.c.b16 %v1209, %v1208
      %v1224 = vpack.c.b16 %v1211, %v1210
      %v1225 = vpack.c.b16 %v1213, %v1212
      %v1226 = vpack.c.b16 %v1215, %v1214
      %v1227 = vpack.c.b16 %v1217, %v1216
      %v1228 = vpack.c.b16 %v1219, %v1218
      %v1229 = vpack.c.b16 %v1221, %v1220
      %1238 = vmatprep.subr.bf16.mxu0 0
      %1239 = vmatpush1.bf16.msra.mxu0 %v1229
      %1240 = vmatprep.subr.bf16.mxu0 0
      %1241 = vmatpush1.bf16.msra.mxu0 %v1228
      %1242 = vmatprep.subr.bf16.mxu0 0
      %1243 = vmatpush1.bf16.msra.mxu0 %v1227
      %1244 = vmatprep.subr.bf16.mxu0 0
      %1245 = vmatpush1.bf16.msra.mxu0 %v1226
      %1246 = vmatprep.subr.bf16.mxu0 0
      %1247 = vmatpush1.bf16.msra.mxu0 %v1225
      %1248 = vmatprep.subr.bf16.mxu0 0
      %1249 = vmatpush1.bf16.msra.mxu0 %v1224
      %1250 = vmatprep.subr.bf16.mxu0 0
      %1251 = vmatpush1.bf16.msra.mxu0 %v1223
      %1252 = vmatprep.subr.bf16.mxu0 0
      %1253 = vmatpush1.bf16.msra.mxu0 %v1222
      %1254 = vmatprep.subr.bf16.mxu0 0
      %1255 = vmatpush2.bf16.msra.mxu0 0
      %1256 = vmatprep.subr.bf16.mxu0 0
      %1257 = vmatpush2.bf16.msra.mxu0 0
      %1258 = vmatprep.subr.bf16.mxu0 0
      %1259 = vmatpush2.bf16.msra.mxu0 0
      %1260 = vmatprep.subr.bf16.mxu0 0
      %1261 = vmatpush2.bf16.msra.mxu0 0
      %1262 = vmatprep.subr.bf16.mxu0 0
      %1263 = vmatpush2.bf16.msra.mxu0 0
      %1264 = vmatprep.subr.bf16.mxu0 0
      %1265 = vmatpush2.bf16.msra.mxu0 0
      %1266 = vmatprep.subr.bf16.mxu0 0
      %1267 = vmatpush2.bf16.msra.mxu0 0
      %1268 = vmatprep.subr.bf16.mxu0 0
      %1269 = vmatpush2.bf16.msra.mxu0 0
      %1270 = vmatprep.mubr.bf16.mxu0 0
      %1271 = vmatmul.mubr.bf16.gmra.mxu0 %v1166
      %v1272 = vpop.f32.mrf.mxu0
      %v1273 = vadd.f32 0.0, %v1272
      %v1274 = vpop.f32.mrf.mxu0
      %v1275 = vpop.f32.mrf.mxu0
      %v1276 = vadd.f32 0.0, %v1275
      %v1277 = vpop.f32.mrf.mxu0
      %1278 = vmatprep.mubr.bf16.mxu0 0
      %1279 = vmatmul.mubr.bf16.gmra.mxu0 %v1167
      %v1280 = vpop.f32.mrf.mxu0
      %v1281 = vadd.f32 0.0, %v1280
      %v1282 = vpop.f32.mrf.mxu0
      %v1283 = vpop.f32.mrf.mxu0
      %v1284 = vadd.f32 0.0, %v1283
      %v1285 = vpop.f32.mrf.mxu0
      %1286 = vmatprep.mubr.bf16.mxu0 0
      %1287 = vmatmul.mubr.bf16.gmra.mxu0 %v1168
      %v1288 = vpop.f32.mrf.mxu0
      %v1289 = vadd.f32 0.0, %v1288
      %v1290 = vpop.f32.mrf.mxu0
      %v1291 = vpop.f32.mrf.mxu0
      %v1292 = vadd.f32 0.0, %v1291
      %v1293 = vpop.f32.mrf.mxu0
      %1294 = vmatprep.mubr.bf16.mxu0 0
      %1295 = vmatmul.mubr.bf16.gmra.mxu0 %v1169
      %v1296 = vpop.f32.mrf.mxu0
      %v1297 = vadd.f32 0.0, %v1296
      %v1298 = vpop.f32.mrf.mxu0
      %v1299 = vpop.f32.mrf.mxu0
      %v1300 = vadd.f32 0.0, %v1299
      %v1301 = vpop.f32.mrf.mxu0
      %1302 = vmatprep.mubr.bf16.mxu0 0
      %1303 = vmatmul.mubr.bf16.gmra.mxu0 %v1170
      %v1304 = vpop.f32.mrf.mxu0
      %v1305 = vadd.f32 0.0, %v1304
      %v1306 = vpop.f32.mrf.mxu0
      %v1307 = vpop.f32.mrf.mxu0
      %v1308 = vadd.f32 0.0, %v1307
      %v1309 = vpop.f32.mrf.mxu0
      %1310 = vmatprep.mubr.bf16.mxu0 0
      %1311 = vmatmul.mubr.bf16.gmra.mxu0 %v1171
      %v1312 = vpop.f32.mrf.mxu0
      %v1313 = vadd.f32 0.0, %v1312
      %v1314 = vpop.f32.mrf.mxu0
      %v1315 = vpop.f32.mrf.mxu0
      %v1316 = vadd.f32 0.0, %v1315
      %v1317 = vpop.f32.mrf.mxu0
      %1318 = vmatprep.mubr.bf16.mxu0 0
      %1319 = vmatmul.mubr.bf16.gmra.mxu0 %v1172
      %v1320 = vpop.f32.mrf.mxu0
      %v1321 = vadd.f32 0.0, %v1320
      %v1322 = vpop.f32.mrf.mxu0
      %v1323 = vpop.f32.mrf.mxu0
      %v1324 = vadd.f32 0.0, %v1323
      %v1325 = vpop.f32.mrf.mxu0
      %1326 = vmatprep.mubr.bf16.mxu0 0
      %1327 = vmatmul.mubr.bf16.gmra.mxu0 %v1173
      %v1328 = vpop.f32.mrf.mxu0
      %v1329 = vadd.f32 0.0, %v1328
      %v1330 = vpop.f32.mrf.mxu0
      %v1331 = vpop.f32.mrf.mxu0
      %v1332 = vadd.f32 0.0, %v1331
      %v1333 = vpop.f32.mrf.mxu0
      %1334 = vdwg.mxu0
      %v1335 = vpack.c.bf16 %v1276, %v1273
      %v1336 = vpack.c.bf16 %v1284, %v1281
      %v1337 = vpack.c.bf16 %v1292, %v1289
      %v1338 = vpack.c.bf16 %v1300, %v1297
      %v1339 = vpack.c.bf16 %v1308, %v1305
      %v1340 = vpack.c.bf16 %v1316, %v1313
      %v1341 = vpack.c.bf16 %v1324, %v1321
      %v1342 = vpack.c.bf16 %v1332, %v1329
      %v1343 = vld [vmem:[%s8] sm:$0x3]
      %v1344 = vld [vmem:[%s9] sm:$0x1]
      %v1346 = vlaneseq
      %v1347 = vshrl.u32 %v1346, 7
      %v1348 = vsub.s32 0, %v1347
      %v1349 = vrot.slane %v1344, %v1348
      %v1352 = vsel %vm740, %v1335, 0
      %v1355 = vsel %vm740, %v1336, 0
      %v1358 = vsel %vm740, %v1337, 0
      %v1361 = vsel %vm740, %v1338, 0
      %v1364 = vsel %vm740, %v1339, 0
      %v1367 = vsel %vm740, %v1340, 0
      %v1370 = vsel %vm740, %v1341, 0
      %v1373 = vsel %vm740, %v1342, 0
      %v1376 = vsel %vm765, %v1343, 0
      %1378 = vmatprep.subr.bf16.mxu0 0
      %1379 = vmatpush1.bf16.msra.mxu0 0
      %1380 = vmatprep.subr.bf16.mxu0 0
      %1381 = vmatpush1.bf16.msra.mxu0 0
      %1382 = vmatprep.subr.bf16.mxu0 0
      %1383 = vmatpush1.bf16.msra.mxu0 0
      %1384 = vmatprep.subr.bf16.mxu0 0
      %1385 = vmatpush1.bf16.msra.mxu0 0
      %1386 = vmatprep.subr.bf16.mxu0 0
      %1387 = vmatpush1.bf16.msra.mxu0 0
      %1388 = vmatprep.subr.bf16.mxu0 0
      %1389 = vmatpush1.bf16.msra.mxu0 0
      %1390 = vmatprep.subr.bf16.mxu0 0
      %1391 = vmatpush1.bf16.msra.mxu0 0
      %1392 = vmatprep.subr.bf16.mxu0 0
      %1393 = vmatpush1.bf16.msra.mxu0 %v1376
      %1394 = vmatprep.subr.bf16.mxu0 0
      %1395 = vmatpush2.bf16.msra.mxu0 0
      %1396 = vmatprep.subr.bf16.mxu0 0
      %1397 = vmatpush2.bf16.msra.mxu0 0
      %1398 = vmatprep.subr.bf16.mxu0 0
      %1399 = vmatpush2.bf16.msra.mxu0 0
      %1400 = vmatprep.subr.bf16.mxu0 0
      %1401 = vmatpush2.bf16.msra.mxu0 0
      %1402 = vmatprep.subr.bf16.mxu0 0
      %1403 = vmatpush2.bf16.msra.mxu0 0
      %1404 = vmatprep.subr.bf16.mxu0 0
      %1405 = vmatpush2.bf16.msra.mxu0 0
      %1406 = vmatprep.subr.bf16.mxu0 0
      %1407 = vmatpush2.bf16.msra.mxu0 0
      %1408 = vmatprep.subr.bf16.mxu0 0
      %1409 = vmatpush2.bf16.msra.mxu0 0
      %1410 = vmatprep.mubr.bf16.mxu0 0
      %1411 = vmatmul.mubr.bf16.gmra.mxu0 %v1352
      %v1412 = vpop.f32.mrf.mxu0
      %v1413 = vadd.f32 %v1349, %v1412
      %v1414 = vpop.f32.mrf.mxu0
      %v1415 = vpop.f32.mrf.mxu0
      %v1416 = vadd.f32 %v1349, %v1415
      %v1417 = vpop.f32.mrf.mxu0
      %1418 = vmatprep.mubr.bf16.mxu0 0
      %1419 = vmatmul.mubr.bf16.gmra.mxu0 %v1355
      %v1420 = vpop.f32.mrf.mxu0
      %v1421 = vadd.f32 %v1349, %v1420
      %v1422 = vpop.f32.mrf.mxu0
      %v1423 = vpop.f32.mrf.mxu0
      %v1424 = vadd.f32 %v1349, %v1423
      %v1425 = vpop.f32.mrf.mxu0
      %1426 = vmatprep.mubr.bf16.mxu0 0
      %1427 = vmatmul.mubr.bf16.gmra.mxu0 %v1358
      %v1428 = vpop.f32.mrf.mxu0
      %v1429 = vadd.f32 %v1349, %v1428
      %v1430 = vpop.f32.mrf.mxu0
      %v1431 = vpop.f32.mrf.mxu0
      %v1432 = vadd.f32 %v1349, %v1431
      %v1433 = vpop.f32.mrf.mxu0
      %1434 = vmatprep.mubr.bf16.mxu0 0
      %1435 = vmatmul.mubr.bf16.gmra.mxu0 %v1361
      %v1436 = vpop.f32.mrf.mxu0
      %v1437 = vadd.f32 %v1349, %v1436
      %v1438 = vpop.f32.mrf.mxu0
      %v1439 = vpop.f32.mrf.mxu0
      %v1440 = vadd.f32 %v1349, %v1439
      %v1441 = vpop.f32.mrf.mxu0
      %1442 = vmatprep.mubr.bf16.mxu0 0
      %1443 = vmatmul.mubr.bf16.gmra.mxu0 %v1364
      %v1444 = vpop.f32.mrf.mxu0
      %v1445 = vadd.f32 %v1349, %v1444
      %v1446 = vpop.f32.mrf.mxu0
      %v1447 = vpop.f32.mrf.mxu0
      %v1448 = vadd.f32 %v1349, %v1447
      %v1449 = vpop.f32.mrf.mxu0
      %1450 = vmatprep.mubr.bf16.mxu0 0
      %1451 = vmatmul.mubr.bf16.gmra.mxu0 %v1367
      %v1452 = vpop.f32.mrf.mxu0
      %v1453 = vadd.f32 %v1349, %v1452
      %v1454 = vpop.f32.mrf.mxu0
      %v1455 = vpop.f32.mrf.mxu0
      %v1456 = vadd.f32 %v1349, %v1455
      %v1457 = vpop.f32.mrf.mxu0
      %1458 = vmatprep.mubr.bf16.mxu0 0
      %1459 = vmatmul.mubr.bf16.gmra.mxu0 %v1370
      %v1460 = vpop.f32.mrf.mxu0
      %v1461 = vadd.f32 %v1349, %v1460
      %v1462 = vpop.f32.mrf.mxu0
      %v1463 = vpop.f32.mrf.mxu0
      %v1464 = vadd.f32 %v1349, %v1463
      %v1465 = vpop.f32.mrf.mxu0
      %1466 = vmatprep.mubr.bf16.mxu0 0
      %1467 = vmatmul.mubr.bf16.gmra.mxu0 %v1373
      %v1468 = vpop.f32.mrf.mxu0
      %v1469 = vadd.f32 %v1349, %v1468
      %v1470 = vpop.f32.mrf.mxu0
      %v1471 = vpop.f32.mrf.mxu0
      %v1472 = vadd.f32 %v1349, %v1471
      %v1473 = vpop.f32.mrf.mxu0
      %1474 = vdwg.mxu0
      %v1475 = vmax.f32 %v1413, 0.0
      %v1476 = vmax.f32 %v1416, 0.0
      %v1477 = vmax.f32 %v1421, 0.0
      %v1478 = vmax.f32 %v1424, 0.0
      %v1479 = vmax.f32 %v1429, 0.0
      %v1480 = vmax.f32 %v1432, 0.0
      %v1481 = vmax.f32 %v1437, 0.0
      %v1482 = vmax.f32 %v1440, 0.0
      %v1483 = vmax.f32 %v1445, 0.0
      %v1484 = vmax.f32 %v1448, 0.0
      %v1485 = vmax.f32 %v1453, 0.0
      %v1486 = vmax.f32 %v1456, 0.0
      %v1487 = vmax.f32 %v1461, 0.0
      %v1488 = vmax.f32 %v1464, 0.0
      %v1489 = vmax.f32 %v1469, 0.0
      %v1490 = vmax.f32 %v1472, 0.0
      %v1491 = vpack.c.bf16 %v1476, %v1475
      %v1492 = vpack.c.bf16 %v1478, %v1477
      %v1493 = vpack.c.bf16 %v1480, %v1479
      %v1494 = vpack.c.bf16 %v1482, %v1481
      %v1495 = vpack.c.bf16 %v1484, %v1483
      %v1496 = vpack.c.bf16 %v1486, %v1485
      %v1497 = vpack.c.bf16 %v1488, %v1487
      %v1498 = vpack.c.bf16 %v1490, %v1489
      %v1499 = vld [vmem:[%s10] sm:$0xf]
      %v1500 = vld [vmem:[%s11] sm:$0xf]
      %v1502 = vsel %vm607, %v1500, 0
      %1504 = vmatprep.subr.bf16.mxu0 0
      %1505 = vmatpush1.bf16.msra.mxu0 0
      %1506 = vmatprep.subr.bf16.mxu0 0
      %1507 = vmatpush1.bf16.msra.mxu0 0
      %1508 = vmatprep.subr.bf16.mxu0 0
      %1509 = vmatpush1.bf16.msra.mxu0 0
      %1510 = vmatprep.subr.bf16.mxu0 0
      %1511 = vmatpush1.bf16.msra.mxu0 0
      %1512 = vmatprep.subr.bf16.mxu0 0
      %1513 = vmatpush1.bf16.msra.mxu0 0
      %1514 = vmatprep.subr.bf16.mxu0 0
      %1515 = vmatpush1.bf16.msra.mxu0 0
      %1516 = vmatprep.subr.bf16.mxu0 0
      %1517 = vmatpush1.bf16.msra.mxu0 0
      %1518 = vmatprep.subr.bf16.mxu0 0
      %1519 = vmatpush1.bf16.msra.mxu0 %v1502
      %1520 = vmatprep.subr.bf16.mxu0 0
      %1521 = vmatpush2.bf16.msra.mxu0 0
      %1522 = vmatprep.subr.bf16.mxu0 0
      %1523 = vmatpush2.bf16.msra.mxu0 0
      %1524 = vmatprep.subr.bf16.mxu0 0
      %1525 = vmatpush2.bf16.msra.mxu0 0
      %1526 = vmatprep.subr.bf16.mxu0 0
      %1527 = vmatpush2.bf16.msra.mxu0 0
      %1528 = vmatprep.subr.bf16.mxu0 0
      %1529 = vmatpush2.bf16.msra.mxu0 0
      %1530 = vmatprep.subr.bf16.mxu0 0
      %1531 = vmatpush2.bf16.msra.mxu0 0
      %1532 = vmatprep.subr.bf16.mxu0 0
      %1533 = vmatpush2.bf16.msra.mxu0 0
      %1534 = vmatprep.subr.bf16.mxu0 0
      %1535 = vmatpush2.bf16.msra.mxu0 0
      %1536 = vmatprep.mubr.bf16.mxu0 0
      %1537 = vmatmul.mubr.bf16.gmra.mxu0 %v584
      %v1538 = vpop.f32.mrf.mxu0
      %v1539 = vadd.f32 0.0, %v1538
      %v1540 = vpop.f32.mrf.mxu0
      %v1541 = vpop.f32.mrf.mxu0
      %v1542 = vadd.f32 0.0, %v1541
      %v1543 = vpop.f32.mrf.mxu0
      %1544 = vmatprep.mubr.bf16.mxu0 0
      %1545 = vmatmul.mubr.bf16.gmra.mxu0 %v587
      %v1546 = vpop.f32.mrf.mxu0
      %v1547 = vadd.f32 0.0, %v1546
      %v1548 = vpop.f32.mrf.mxu0
      %v1549 = vpop.f32.mrf.mxu0
      %v1550 = vadd.f32 0.0, %v1549
      %v1551 = vpop.f32.mrf.mxu0
      %1552 = vmatprep.mubr.bf16.mxu0 0
      %1553 = vmatmul.mubr.bf16.gmra.mxu0 %v590
      %v1554 = vpop.f32.mrf.mxu0
      %v1555 = vadd.f32 0.0, %v1554
      %v1556 = vpop.f32.mrf.mxu0
      %v1557 = vpop.f32.mrf.mxu0
      %v1558 = vadd.f32 0.0, %v1557
      %v1559 = vpop.f32.mrf.mxu0
      %1560 = vmatprep.mubr.bf16.mxu0 0
      %1561 = vmatmul.mubr.bf16.gmra.mxu0 %v593
      %v1562 = vpop.f32.mrf.mxu0
      %v1563 = vadd.f32 0.0, %v1562
      %v1564 = vpop.f32.mrf.mxu0
      %v1565 = vpop.f32.mrf.mxu0
      %v1566 = vadd.f32 0.0, %v1565
      %v1567 = vpop.f32.mrf.mxu0
      %1568 = vmatprep.mubr.bf16.mxu0 0
      %1569 = vmatmul.mubr.bf16.gmra.mxu0 %v596
      %v1570 = vpop.f32.mrf.mxu0
      %v1571 = vadd.f32 0.0, %v1570
      %v1572 = vpop.f32.mrf.mxu0
      %v1573 = vpop.f32.mrf.mxu0
      %v1574 = vadd.f32 0.0, %v1573
      %v1575 = vpop.f32.mrf.mxu0
      %1576 = vmatprep.mubr.bf16.mxu0 0
      %1577 = vmatmul.mubr.bf16.gmra.mxu0 %v599
      %v1578 = vpop.f32.mrf.mxu0
      %v1579 = vadd.f32 0.0, %v1578
      %v1580 = vpop.f32.mrf.mxu0
      %v1581 = vpop.f32.mrf.mxu0
      %v1582 = vadd.f32 0.0, %v1581
      %v1583 = vpop.f32.mrf.mxu0
      %1584 = vmatprep.mubr.bf16.mxu0 0
      %1585 = vmatmul.mubr.bf16.gmra.mxu0 %v602
      %v1586 = vpop.f32.mrf.mxu0
      %v1587 = vadd.f32 0.0, %v1586
      %v1588 = vpop.f32.mrf.mxu0
      %v1589 = vpop.f32.mrf.mxu0
      %v1590 = vadd.f32 0.0, %v1589
      %v1591 = vpop.f32.mrf.mxu0
      %1592 = vmatprep.mubr.bf16.mxu0 0
      %1593 = vmatmul.mubr.bf16.gmra.mxu0 %v605
      %v1594 = vpop.f32.mrf.mxu0
      %v1595 = vadd.f32 0.0, %v1594
      %v1596 = vpop.f32.mrf.mxu0
      %v1597 = vpop.f32.mrf.mxu0
      %v1598 = vadd.f32 0.0, %v1597
      %v1599 = vpop.f32.mrf.mxu0
      %1600 = vdwg.mxu0
      %v1602 = vsel %vm582, %v1491, 0
      %v1605 = vsel %vm582, %v1492, 0
      %v1608 = vsel %vm582, %v1493, 0
      %v1611 = vsel %vm582, %v1494, 0
      %v1614 = vsel %vm582, %v1495, 0
      %v1617 = vsel %vm582, %v1496, 0
      %v1620 = vsel %vm582, %v1497, 0
      %v1623 = vsel %vm582, %v1498, 0
      %v1626 = vsel %vm607, %v1499, 0
      %1628 = vmatprep.subr.bf16.mxu0 0
      %1629 = vmatpush1.bf16.msra.mxu0 0
      %1630 = vmatprep.subr.bf16.mxu0 0
      %1631 = vmatpush1.bf16.msra.mxu0 0
      %1632 = vmatprep.subr.bf16.mxu0 0
      %1633 = vmatpush1.bf16.msra.mxu0 0
      %1634 = vmatprep.subr.bf16.mxu0 0
      %1635 = vmatpush1.bf16.msra.mxu0 0
      %1636 = vmatprep.subr.bf16.mxu0 0
      %1637 = vmatpush1.bf16.msra.mxu0 0
      %1638 = vmatprep.subr.bf16.mxu0 0
      %1639 = vmatpush1.bf16.msra.mxu0 0
      %1640 = vmatprep.subr.bf16.mxu0 0
      %1641 = vmatpush1.bf16.msra.mxu0 0
      %1642 = vmatprep.subr.bf16.mxu0 0
      %1643 = vmatpush1.bf16.msra.mxu0 %v1626
      %1644 = vmatprep.subr.bf16.mxu0 0
      %1645 = vmatpush2.bf16.msra.mxu0 0
      %1646 = vmatprep.subr.bf16.mxu0 0
      %1647 = vmatpush2.bf16.msra.mxu0 0
      %1648 = vmatprep.subr.bf16.mxu0 0
      %1649 = vmatpush2.bf16.msra.mxu0 0
      %1650 = vmatprep.subr.bf16.mxu0 0
      %1651 = vmatpush2.bf16.msra.mxu0 0
      %1652 = vmatprep.subr.bf16.mxu0 0
      %1653 = vmatpush2.bf16.msra.mxu0 0
      %1654 = vmatprep.subr.bf16.mxu0 0
      %1655 = vmatpush2.bf16.msra.mxu0 0
      %1656 = vmatprep.subr.bf16.mxu0 0
      %1657 = vmatpush2.bf16.msra.mxu0 0
      %1658 = vmatprep.subr.bf16.mxu0 0
      %1659 = vmatpush2.bf16.msra.mxu0 0
      %1660 = vmatprep.mubr.bf16.mxu0 0
      %1661 = vmatmul.mubr.bf16.gmra.mxu0 %v1602
      %v1662 = vpop.f32.mrf.mxu0
      %v1663 = vadd.f32 %v1539, %v1662
      %v1664 = vpop.f32.mrf.mxu0
      %v1665 = vpop.f32.mrf.mxu0
      %v1666 = vadd.f32 %v1542, %v1665
      %v1667 = vpop.f32.mrf.mxu0
      %1668 = vmatprep.mubr.bf16.mxu0 0
      %1669 = vmatmul.mubr.bf16.gmra.mxu0 %v1605
      %v1670 = vpop.f32.mrf.mxu0
      %v1671 = vadd.f32 %v1547, %v1670
      %v1672 = vpop.f32.mrf.mxu0
      %v1673 = vpop.f32.mrf.mxu0
      %v1674 = vadd.f32 %v1550, %v1673
      %v1675 = vpop.f32.mrf.mxu0
      %1676 = vmatprep.mubr.bf16.mxu0 0
      %1677 = vmatmul.mubr.bf16.gmra.mxu0 %v1608
      %v1678 = vpop.f32.mrf.mxu0
      %v1679 = vadd.f32 %v1555, %v1678
      %v1680 = vpop.f32.mrf.mxu0
      %v1681 = vpop.f32.mrf.mxu0
      %v1682 = vadd.f32 %v1558, %v1681
      %v1683 = vpop.f32.mrf.mxu0
      %1684 = vmatprep.mubr.bf16.mxu0 0
      %1685 = vmatmul.mubr.bf16.gmra.mxu0 %v1611
      %v1686 = vpop.f32.mrf.mxu0
      %v1687 = vadd.f32 %v1563, %v1686
      %v1688 = vpop.f32.mrf.mxu0
      %v1689 = vpop.f32.mrf.mxu0
      %v1690 = vadd.f32 %v1566, %v1689
      %v1691 = vpop.f32.mrf.mxu0
      %1692 = vmatprep.mubr.bf16.mxu0 0
      %1693 = vmatmul.mubr.bf16.gmra.mxu0 %v1614
      %v1694 = vpop.f32.mrf.mxu0
      %v1695 = vadd.f32 %v1571, %v1694
      %v1696 = vpop.f32.mrf.mxu0
      %v1697 = vpop.f32.mrf.mxu0
      %v1698 = vadd.f32 %v1574, %v1697
      %v1699 = vpop.f32.mrf.mxu0
      %1700 = vmatprep.mubr.bf16.mxu0 0
      %1701 = vmatmul.mubr.bf16.gmra.mxu0 %v1617
      %v1702 = vpop.f32.mrf.mxu0
      %v1703 = vadd.f32 %v1579, %v1702
      %v1704 = vpop.f32.mrf.mxu0
      %v1705 = vpop.f32.mrf.mxu0
      %v1706 = vadd.f32 %v1582, %v1705
      %v1707 = vpop.f32.mrf.mxu0
      %1708 = vmatprep.mubr.bf16.mxu0 0
      %1709 = vmatmul.mubr.bf16.gmra.mxu0 %v1620
      %v1710 = vpop.f32.mrf.mxu0
      %v1711 = vadd.f32 %v1587, %v1710
      %v1712 = vpop.f32.mrf.mxu0
      %v1713 = vpop.f32.mrf.mxu0
      %v1714 = vadd.f32 %v1590, %v1713
      %v1715 = vpop.f32.mrf.mxu0
      %1716 = vmatprep.mubr.bf16.mxu0 0
      %1717 = vmatmul.mubr.bf16.gmra.mxu0 %v1623
      %v1718 = vpop.f32.mrf.mxu0
      %v1719 = vadd.f32 %v1595, %v1718
      %v1720 = vpop.f32.mrf.mxu0
      %v1721 = vpop.f32.mrf.mxu0
      %v1722 = vadd.f32 %v1598, %v1721
      %v1723 = vpop.f32.mrf.mxu0
      %1724 = vdwg.mxu0
      %v1725 = vld [vmem:[%s12] sm:$0x1]
      %v1727 = vlaneseq
      %v1728 = vshrl.u32 %v1727, 7
      %v1729 = vsub.s32 0, %v1728
      %v1730 = vrot.slane %v1725, %v1729
      %v1732 = vadd.f32 %v1663, %v1730
      %v1733 = vadd.f32 %v1666, %v1730
      %v1734 = vadd.f32 %v1671, %v1730
      %v1735 = vadd.f32 %v1674, %v1730
      %v1736 = vadd.f32 %v1679, %v1730
      %v1737 = vadd.f32 %v1682, %v1730
      %v1738 = vadd.f32 %v1687, %v1730
      %v1739 = vadd.f32 %v1690, %v1730
      %v1740 = vadd.f32 %v1695, %v1730
      %v1741 = vadd.f32 %v1698, %v1730
      %v1742 = vadd.f32 %v1703, %v1730
      %v1743 = vadd.f32 %v1706, %v1730
      %v1744 = vadd.f32 %v1711, %v1730
      %v1745 = vadd.f32 %v1714, %v1730
      %v1746 = vadd.f32 %v1719, %v1730
      %v1747 = vadd.f32 %v1722, %v1730
      %v1748 = vmax.f32 %v1732, 0.0
      %v1749 = vmax.f32 %v1733, 0.0
      %v1750 = vmax.f32 %v1734, 0.0
      %v1751 = vmax.f32 %v1735, 0.0
      %v1752 = vmax.f32 %v1736, 0.0
      %v1753 = vmax.f32 %v1737, 0.0
      %v1754 = vmax.f32 %v1738, 0.0
      %v1755 = vmax.f32 %v1739, 0.0
      %v1756 = vmax.f32 %v1740, 0.0
      %v1757 = vmax.f32 %v1741, 0.0
      %v1758 = vmax.f32 %v1742, 0.0
      %v1759 = vmax.f32 %v1743, 0.0
      %v1760 = vmax.f32 %v1744, 0.0
      %v1761 = vmax.f32 %v1745, 0.0
      %v1762 = vmax.f32 %v1746, 0.0
      %v1763 = vmax.f32 %v1747, 0.0
      %v1764 = vpack.c.bf16 %v1749, %v1748
      %v1765 = vpack.c.bf16 %v1751, %v1750
      %v1766 = vpack.c.bf16 %v1753, %v1752
      %v1767 = vpack.c.bf16 %v1755, %v1754
      %v1768 = vpack.c.bf16 %v1757, %v1756
      %v1769 = vpack.c.bf16 %v1759, %v1758
      %v1770 = vpack.c.bf16 %v1761, %v1760
      %v1771 = vpack.c.bf16 %v1763, %v1762
      %v1780 = vunpack.c.l.b16 %v1764
      %v1781 = vunpack.c.h.b16 %v1764
      %v1782 = vunpack.c.l.b16 %v1765
      %v1783 = vunpack.c.h.b16 %v1765
      %v1784 = vunpack.c.l.b16 %v1766
      %v1785 = vunpack.c.h.b16 %v1766
      %v1786 = vunpack.c.l.b16 %v1767
      %v1787 = vunpack.c.h.b16 %v1767
      %v1788 = vunpack.c.l.b16 %v1768
      %v1789 = vunpack.c.h.b16 %v1768
      %v1790 = vunpack.c.l.b16 %v1769
      %v1791 = vunpack.c.h.b16 %v1769
      %v1792 = vunpack.c.l.b16 %v1770
      %v1793 = vunpack.c.h.b16 %v1770
      %v1794 = vunpack.c.l.b16 %v1771
      %v1795 = vunpack.c.h.b16 %v1771
      %v1796 = vpack.c.b16 %v1780, %v1780
      %v1797 = vpack.c.b16 %v1781, %v1781
      %v1798 = vpack.c.b16 %v1782, %v1782
      %v1799 = vpack.c.b16 %v1783, %v1783
      %v1800 = vpack.c.b16 %v1784, %v1784
      %v1801 = vpack.c.b16 %v1785, %v1785
      %v1802 = vpack.c.b16 %v1786, %v1786
      %v1803 = vpack.c.b16 %v1787, %v1787
      %v1804 = vpack.c.b16 %v1788, %v1788
      %v1805 = vpack.c.b16 %v1789, %v1789
      %v1806 = vpack.c.b16 %v1790, %v1790
      %v1807 = vpack.c.b16 %v1791, %v1791
      %v1808 = vpack.c.b16 %v1792, %v1792
      %v1809 = vpack.c.b16 %v1793, %v1793
      %v1810 = vpack.c.b16 %v1794, %v1794
      %v1811 = vpack.c.b16 %v1795, %v1795
      %vm1828 = vcmask 60416
      %1829 = vst.msk [vmem:[%s515] sm:$0xf] %vm1828, %v1796
      %1830 = vst.msk [vmem:[%s515 + $0x4] sm:$0xf] %vm1828, %v1797
      %1831 = vst.msk [vmem:[%s515 + $0x8] sm:$0xf] %vm1828, %v1798
      %1832 = vst.msk [vmem:[%s515 + $0xc] sm:$0xf] %vm1828, %v1799
      %1833 = vst.msk [vmem:[%s515 + $0x10] sm:$0xf] %vm1828, %v1800
      %1834 = vst.msk [vmem:[%s515 + $0x14] sm:$0xf] %vm1828, %v1801
      %1835 = vst.msk [vmem:[%s515 + $0x18] sm:$0xf] %vm1828, %v1802
      %1836 = vst.msk [vmem:[%s515 + $0x1c] sm:$0xf] %vm1828, %v1803
      %1837 = vst.msk [vmem:[%s515 + $0x20] sm:$0xf] %vm1828, %v1804
      %1838 = vst.msk [vmem:[%s515 + $0x24] sm:$0xf] %vm1828, %v1805
      %1839 = vst.msk [vmem:[%s515 + $0x28] sm:$0xf] %vm1828, %v1806
      %1840 = vst.msk [vmem:[%s515 + $0x2c] sm:$0xf] %vm1828, %v1807
      %1841 = vst.msk [vmem:[%s515 + $0x30] sm:$0xf] %vm1828, %v1808
      %1842 = vst.msk [vmem:[%s515 + $0x34] sm:$0xf] %vm1828, %v1809
      %1843 = vst.msk [vmem:[%s515 + $0x38] sm:$0xf] %vm1828, %v1810
      %1844 = vst.msk [vmem:[%s515 + $0x3c] sm:$0xf] %vm1828, %v1811
      %s1845 = smul.u32 16, %s29
      %p1846 = scmp.lt.s32.totalorder %s28, 1
      %s1847 = scalar_select %p1846, %s28, 1
      %p1848 = scmp.lt.s32.totalorder %s1845, 31
      %s1849 = scalar_select %p1848, %s1845, 31
      %s1850 = smul.addr %s1847, 32
      %s1851 = sadd.s32 %s1849, %s1850
      %s1852 = smul.addr %s1851, 4
      %s1853 = scalar_lea.vmem %s13, %s1852
      // Predicated region
      $region73: #{tpu_custom_call.1} parent=71 // pred_check
        %p1854 = pneg %p346
      $region74: #{tpu_custom_call.1} parent=71 // pred_check_branch
        %1856 = sbr.rel (%p1854) target = $region76
      $region75: #{tpu_custom_call.1} parent=71 // pred_region
        %s1857 = smul.u32 16, %s29
      $region76: #{tpu_custom_call.1} parent=71 // pred_fallthru
        _
    $region72: #{tpu_custom_call.1} parent=5 // pred_fallthru
      _
    %p1858 = scmp.le.s32.totalorder 2, %s19
    // Predicated region
    $region77: #{tpu_custom_call.1} parent=5 // pred_check
      %p1859 = pneg %p1858
    $region78: #{tpu_custom_call.1} parent=5 // pred_check_branch
      %1861 = sbr.rel (%p1859) target = $region80
    $region79: #{tpu_custom_call.1} parent=5 // pred_region
      %s1862 = ssub.s32 %s19, 2
      // Predicated region
      $region81: #{tpu_custom_call.1} parent=79 // pred_check
        %p1863 = pneg %p352
      $region82: #{tpu_custom_call.1} parent=79 // pred_check_branch
        %1865 = sbr.rel (%p1863) target = $region84
      $region83: #{tpu_custom_call.1} parent=79 // pred_region
        %s1866 = smul.u32 16, %s31
        %p1867 = scmp.lt.s32.totalorder %s30, 1
        %s1868 = scalar_select %p1867, %s30, 1
        %p1869 = scmp.lt.s32.totalorder %s1866, 31
        %s1870 = scalar_select %p1869, %s1866, 31
        %s1871 = smul.addr %s1868, 32
        %s1872 = sadd.s32 %s1870, %s1871
        %s1873 = smul.addr %s1872, 4
        %s1874 = scalar_lea.vmem %s13, %s1873
      $region84: #{tpu_custom_call.1} parent=79 // pred_fallthru
        _
    $region80: #{tpu_custom_call.1} parent=5 // pred_fallthru
      _
  $region6: #{tpu_custom_call.1} parent=0 // loop_footer
    %s23 = sadd.s32 1, %s19
  $region7: #{tpu_custom_call.1} parent=0 // loop_footer_branch
    %18 = sbr.rel target = $region3
  $region8: #{tpu_custom_call.1} parent=0 // loop_exit
    _

</llo_original>
